<compile_context>
chip_gen: v7x
topology: tpu7x:2x2x1
jax: 0.10.0
libtpu: 0.0.40
codegen_flags: <defaults>
</compile_context>

<pallas_src>
import functools
import math

import jax
import jax.numpy as jnp
from jax import lax
from jax.experimental import pallas as pl
from jax.experimental.pallas import tpu as pltpu


# ---------------------------------------------------------------------------
# small math helpers (VPU/EUP ops)
# ---------------------------------------------------------------------------
def _silu(x):
    # exact SiLU (approx-reciprocal variant removed per correctness review)
    return x / (1.0 + jnp.exp(-x))


def _softplus(x):
    # matches torch.nn.functional.softplus (beta=1, threshold=20)
    return jnp.where(x > 20.0, x, jnp.log(1.0 + jnp.exp(jnp.minimum(x, 20.0))))


_ERF_A = (0.254829592, -0.284496736, 1.421413741, -1.453152027, 1.061405429)
_ERF_P = 0.3275911


def _erf_poly(x, recip):
    # Abramowitz & Stegun 7.1.26 (max abs err ~1.5e-7); reciprocal pluggable
    a1, a2, a3, a4, a5 = _ERF_A
    s = jnp.where(x >= 0.0, 1.0, -1.0)
    ax = jnp.abs(x)
    t = recip(1.0 + _ERF_P * ax)
    poly = ((((a5 * t + a4) * t + a3) * t + a2) * t + a1) * t
    return s * (1.0 - poly * jnp.exp(-ax * ax))


def _gelu_kernel(x):
    # exact-erf GELU; reciprocal on the EUP slot (full precision) off the VALU
    e = _erf_poly(x * (1.0 / math.sqrt(2.0)),
                  lambda v: pl.reciprocal(v, approx=False))
    return 0.5 * x * (1.0 + e)


def _gelu_ref(x):
    e = _erf_poly(x * (1.0 / math.sqrt(2.0)), lambda v: 1.0 / v)
    return 0.5 * x * (1.0 + e)


# ---------------------------------------------------------------------------
# Pallas kernel: grid = (batch, sequence-chunk)
# ---------------------------------------------------------------------------
def _mamba3d_block_kernel(
        x_ref,
        w_in_ref, conv_w_ref, conv_b_ref, w_xp_ref, w_dt_ref, b_dt_ref,
        a_ref, d_ref, w_out_ref, ln_g_ref, ln_b_ref,
        w1_ref, b1_ref, w2_ref, b2_ref,
        out_ref,
        h_sref, tail_sref, dt_sref, u_sref, bm_sref, cm_sref, y_sref,
        *, TL, DI, N, R, K, SB, OFF_B, OFF_C):
    f32 = jnp.float32
    bf16 = jnp.bfloat16
    ci = pl.program_id(1)

    # reset carried state at the start of every sequence (chunk 0)
    @pl.when(ci == 0)
    def _():
        h_sref[...] = jnp.zeros_like(h_sref)
        tail_sref[...] = jnp.zeros_like(tail_sref)

    x = x_ref[...].astype(bf16)                                     # (TL, D)

    # ---- fused in_proj: one (TL,D)@(D,2*DI) MXU pass, slice x / z halves ----
    xz = jnp.dot(x, w_in_ref[...], preferred_element_type=f32)      # (TL, 2*DI)
    x_in = xz[:, :DI]
    z = xz[:, DI:]

    # ---- causal depthwise conv1d (k=K): prepend carried tail, K static slices
    cw = conv_w_ref[...]                                            # (K, DI)
    tail = tail_sref[...]                                           # (K-1, DI)
    tail_sref[...] = x_in[TL - (K - 1):, :]                         # carry -> next chunk
    x_ext = jnp.concatenate([tail, x_in], axis=0)                   # (TL+K-1, DI)
    acc = x_in * cw[K - 1:K, :]                                     # tap k = K-1
    for k in range(K - 1):                                          # remaining taps
        acc = acc + x_ext[k:k + TL, :] * cw[k:k + 1, :]
    xc = _silu(acc + conv_b_ref[...])                               # (TL, DI)

    # ---- fused, lane-aligned x_proj: [dt_low | B | C] at 128-lane offsets ----
    dbc = jnp.dot(xc.astype(bf16), w_xp_ref[...], preferred_element_type=f32)
    dt_low = dbc[:, :R]
    Bm = dbc[:, OFF_B:OFF_B + N]
    Cm = dbc[:, OFF_C:OFF_C + N]

    dt = jnp.dot(dt_low.astype(bf16), w_dt_ref[...],
                 preferred_element_type=f32) + b_dt_ref[...]
    dt = _softplus(dt)                                              # (TL, DI)

    # ---- selective scan: sub-blocked, MXU-free, batched y stores ----
    dt_sref[...] = dt
    u_sref[...] = dt * xc
    bm_sref[...] = Bm
    cm_sref[...] = Cm
    A = a_ref[...]                                                  # (N, DI) = -exp(A_log).T
    eye_n = (lax.broadcasted_iota(jnp.int32, (N, N), 0) ==
             lax.broadcasted_iota(jnp.int32, (N, N), 1)).astype(f32)

    NB = TL // SB

    def scan_sub_block(j, h):
        t0 = pl.multiple_of(j * SB, SB)
        ys = []
        for s in range(SB):                                         # static unroll
            dt_s = dt_sref[pl.ds(t0 + s, 1), :]                     # (1, DI)
            u_s = u_sref[pl.ds(t0 + s, 1), :]                       # (1, DI)
            b_row = bm_sref[pl.ds(t0 + s, 1), :]                    # (1, N)
            c_row = cm_sref[pl.ds(t0 + s, 1), :]                    # (1, N)
            # lane -> sublane move of the tiny B/C rows (VPU + lane-reduce)
            b_col = jnp.sum(eye_n * b_row, axis=1, keepdims=True)   # (N, 1)
            c_col = jnp.sum(eye_n * c_row, axis=1, keepdims=True)   # (N, 1)
            h = jnp.exp(dt_s * A) * h + b_col * u_s                 # (N, DI)
            # C-contraction on VPU/XLU (no MXU, no HIGHEST)
            ys.append(jnp.sum(c_col * h, axis=0, keepdims=True))    # (1, DI)
        y_sref[pl.ds(t0, SB), :] = jnp.concatenate(ys, axis=0)      # one (SB,DI) store
        return h

    h_fin = lax.fori_loop(0, NB, scan_sub_block, h_sref[...])
    h_sref[...] = h_fin                                             # carry -> next chunk

    y = y_sref[...] + xc * d_ref[...]                               # D skip
    y = y * _silu(z)                                                # gate (exact)

    mamba_out = jnp.dot(y.astype(bf16), w_out_ref[...],
                        preferred_element_type=f32)                 # (TL, D)

    # ---- LayerNorm(d_model), eps = 1e-5 ----
    mu = jnp.mean(mamba_out, axis=-1, keepdims=True)
    var = jnp.mean(jnp.square(mamba_out - mu), axis=-1, keepdims=True)
    xn = (mamba_out - mu) * lax.rsqrt(var + 1e-5) * ln_g_ref[...] + ln_b_ref[...]

    # ---- FFN: Linear -> GELU(exact erf) -> Linear (dropout = identity) ----
    h1 = jnp.dot(xn.astype(bf16), w1_ref[...], preferred_element_type=f32) + b1_ref[...]
    h1 = _gelu_kernel(h1)
    ffn = jnp.dot(h1.astype(bf16), w2_ref[...], preferred_element_type=f32) + b2_ref[...]

    # ---- outer residual: x = mamba_out + ffn(norm(mamba_out)) ----
    out_ref[...] = (mamba_out + ffn).astype(out_ref.dtype)


def _choose_seq_tile(L, seq_chunk, K):
    """Largest TL dividing L with TL <= seq_chunk and TL % 8 == 0 (or TL==L)."""
    if L <= seq_chunk:
        return L
    for d in range(seq_chunk, 0, -1):
        if L % d == 0 and d % 8 == 0 and d >= K:
            return d
    # fallback: whole sequence in one chunk.  NOTE: for very long, awkwardly
    # sized L this can exceed the v7x 64 MiB VMEM budget — prefer L % 8 == 0.
    return L


def mamba3d_block_forward(x, params, *, seq_chunk=256, scan_block=8):
    B, L, D = x.shape
    DI = params["w_in"].shape[1] // 2        # d_inner
    N = params["a_log"].shape[1]             # d_state
    R = params["w_xp"].shape[1] - 2 * N      # dt_rank
    K = params["conv_w"].shape[0]            # d_conv

    TL = _choose_seq_tile(L, seq_chunk, K)
    NC = L // TL
    assert TL * NC == L
    assert TL >= K - 1, "sequence chunk must cover the conv receptive tail"
    SB = next(s for s in (scan_block, 8, 4, 2, 1) if s >= 1 and TL % s == 0)

    f32, bf16 = jnp.float32, jnp.bfloat16

    def _rup(v, m=128):
        return ((max(v, 1) + m - 1) // m) * m

    # lane-aligned fused x_proj weight: [dt_low | pad | B | pad | C | pad]
    off_b = _rup(R)
    off_c = off_b + _rup(N)
    w_xp = params["w_xp"].astype(f32)
    w_xp_pad = jnp.zeros((DI, off_c + _rup(N)), f32)
    w_xp_pad = w_xp_pad.at[:, :R].set(w_xp[:, :R])
    w_xp_pad = w_xp_pad.at[:, off_b:off_b + N].set(w_xp[:, R:R + N])
    w_xp_pad = w_xp_pad.at[:, off_c:off_c + N].set(w_xp[:, R + N:R + 2 * N])

    a_t = (-jnp.exp(params["a_log"])).T.astype(f32)       # (N, DI), precomputed

    weights = (
        params["w_in"].astype(bf16),
        params["conv_w"].astype(f32), params["conv_b"].astype(f32),
        w_xp_pad.astype(bf16),
        params["w_dt"].astype(bf16), params["b_dt"].astype(f32),
        a_t, params["d"].astype(f32),
        params["w_out"].astype(bf16),
        params["ln_g"].astype(f32), params["ln_b"].astype(f32),
        params["w1"].astype(bf16), params["b1"].astype(f32),
        params["w2"].astype(bf16), params["b2"].astype(f32),
    )

    kernel = functools.partial(
        _mamba3d_block_kernel,
        TL=TL, DI=DI, N=N, R=R, K=K, SB=SB, OFF_B=off_b, OFF_C=off_c)

    def _full(arr):
        zero = (0,) * arr.ndim
        return pl.BlockSpec(arr.shape, lambda b, c, _z=zero: _z)

    # TODO(synk): pipeline_mode=pl.Buffered(1) on these constant-index weight
    #             specs would halve weight VMEM residency on v7x.
    in_specs = [pl.BlockSpec((None, TL, D), lambda b, c: (b, c, 0))]
    in_specs += [_full(w) for w in weights]

    # generation-aware VMEM budget (~80% of physical, capped at 100 MiB):
    # ~51 MiB on v7x (64 MiB VMEM), 100 MiB on v5e/v6e (128 MiB VMEM).
    try:
        vmem_cap = int(pltpu.get_tpu_info().vmem_capacity_bytes)
    except Exception:
        vmem_cap = 128 * 1024 * 1024
    vmem_limit = min((vmem_cap * 4) // 5, 100 * 1024 * 1024)

    return pl.pallas_call(
        kernel,
        out_shape=jax.ShapeDtypeStruct((B, L, D), x.dtype),
        grid=(B, NC),
        in_specs=in_specs,
        out_specs=pl.BlockSpec((None, TL, D), lambda b, c: (b, c, 0)),
        scratch_shapes=[
            pltpu.VMEM((N, DI), f32),        # h       (carried across chunks)
            pltpu.VMEM((K - 1, DI), f32),    # conv tail (carried across chunks)
            pltpu.VMEM((TL, DI), f32),       # dt rows for the scan
            pltpu.VMEM((TL, DI), f32),       # u = dt * xc rows
            pltpu.VMEM((TL, N), f32),        # B rows
            pltpu.VMEM((TL, N), f32),        # C rows
            pltpu.VMEM((TL, DI), f32),       # y
        ],
        compiler_params=pltpu.CompilerParams(
            dimension_semantics=("parallel", "arbitrary"),
            vmem_limit_bytes=vmem_limit),
    )(x, *weights)


# ---------------------------------------------------------------------------
# deterministic parameter init (shapes follow the PyTorch module __init__)
# ---------------------------------------------------------------------------
def init_params(key, d_model, d_state=16, d_conv=4, expand=2, d_ff=None):
    if d_ff is None:
        d_ff = int(d_model * 2)
    d_inner = expand * d_model
    dt_rank = math.ceil(d_model / 16)
    ks = jax.random.split(key, 11)

    def lin(k, fan_in, shape):
        bound = 1.0 / math.sqrt(fan_in)
        return jax.random.uniform(k, shape, jnp.float32, -bound, bound)

    a_log = jnp.tile(
        jnp.log(jnp.arange(1, d_state + 1, dtype=jnp.float32))[None, :],
        (d_inner, 1))                                        # (DI, N)

    return dict(
        w_in=lin(ks[0], d_model, (d_model, 2 * d_inner)),    # in_proj.weight.T (fused)
        conv_w=lin(ks[1], d_conv, (d_conv, d_inner)),        # conv1d weight (K, DI)
        conv_b=lin(ks[2], d_conv, (1, d_inner)),             # conv1d bias
        w_xp=lin(ks[3], d_inner, (d_inner, dt_rank + 2 * d_state)),  # x_proj.weight.T (fused)
        w_dt=lin(ks[4], dt_rank, (dt_rank, d_inner)),        # dt_proj.weight.T
        b_dt=lin(ks[5], dt_rank, (1, d_inner)),              # dt_proj.bias
        a_log=a_log,
        d=jnp.ones((1, d_inner), jnp.float32),               # D skip
        w_out=lin(ks[6], d_inner, (d_inner, d_model)),       # out_proj.weight.T
        ln_g=jnp.ones((1, d_model), jnp.float32),
        ln_b=jnp.zeros((1, d_model), jnp.float32),
        w1=lin(ks[7], d_model, (d_model, d_ff)),
        b1=lin(ks[8], d_model, (1, d_ff)),
        w2=lin(ks[9], d_ff, (d_ff, d_model)),
        b2=lin(ks[10], d_ff, (1, d_model)),
    )


# ---------------------------------------------------------------------------
# pure-JAX reference (same math, same bf16 matmul casts) for a sanity check
# ---------------------------------------------------------------------------
def _reference_forward(x, p):
    f32, bf16 = jnp.float32, jnp.bfloat16
    DI = p["w_in"].shape[1] // 2
    N = p["a_log"].shape[1]
    R = p["w_xp"].shape[1] - 2 * N
    K = p["conv_w"].shape[0]
    A = (-jnp.exp(p["a_log"])).T                            # (N, DI)

    def mm(a, w):
        return jnp.dot(a.astype(bf16), w.astype(bf16), preferred_element_type=f32)

    def one(xb):                                            # (L, D)
        L = xb.shape[0]
        xz = mm(xb, p["w_in"])
        x_in, z = xz[:, :DI], xz[:, DI:]
        xpad = jnp.concatenate([jnp.zeros((K - 1, DI), f32), x_in], axis=0)
        conv = sum(xpad[k:k + L] * p["conv_w"][k][None, :] for k in range(K))
        conv = conv + p["conv_b"]
        xc = _silu(conv)
        dbc = mm(xc, p["w_xp"])
        dt_low, Bm, Cm = dbc[:, :R], dbc[:, R:R + N], dbc[:, R + N:]
        dt = _softplus(mm(dt_low, p["w_dt"]) + p["b_dt"])

        def step(h, inp):
            dt_t, u_t, b_t, c_t = inp
            h = jnp.exp(dt_t[None, :] * A) * h + b_t[:, None] * u_t[None, :]
            return h, jnp.sum(h * c_t[:, None], axis=0)

        _, ys = jax.lax.scan(step, jnp.zeros((N, DI), f32), (dt, dt * xc, Bm, Cm))
        y = (ys + xc * p["d"]) * _silu(z)
        mo = mm(y, p["w_out"])
        mu = mo.mean(-1, keepdims=True)
        var = jnp.square(mo - mu).mean(-1, keepdims=True)
        xn = (mo - mu) * lax.rsqrt(var + 1e-5) * p["ln_g"] + p["ln_b"]
        h1 = _gelu_ref(mm(xn, p["w1"]) + p["b1"])
        return mo + mm(h1, p["w2"]) + p["b2"]

    return jax.vmap(one)(x)


if __name__ == "__main__":
    key = jax.random.PRNGKey(0)
    k_x, k_p = jax.random.split(key)

    # small shapes consistent with the module; seq chunked 16 -> 2 x 8 to
    # exercise the cross-chunk h / conv-tail carry path (B=2 also keeps the
    # "parallel" batch axis megacore-friendly on v7x).
    B, L, d_model = 2, 16, 32
    x = jax.random.normal(k_x, (B, L, d_model), jnp.float32)
    params = init_params(k_p, d_model=d_model, d_state=16, d_conv=4, expand=2)

    out = mamba3d_block_forward(x, params, seq_chunk=8)
    out = jax.block_until_ready(out)
    assert out.shape == (B, L, d_model)
    assert bool(jnp.all(jnp.isfinite(out)))

    ref = _reference_forward(x, params)
    max_err = float(jnp.max(jnp.abs(out - ref)))
    assert max_err < 2e-2, f"kernel vs reference mismatch: {max_err}"

    print("KERNEL_OK")
</pallas_src>

<mosaic_0001>
module attributes {stable_mosaic.version = 11 : i64} {
  func.func @_mamba3d_block_kernel(%arg0: i32, %arg1: i32, %arg2: memref<1x8x32xf32, #tpu.memory_space<vmem>>, %arg3: memref<32x128xbf16, #tpu.memory_space<vmem>>, %arg4: memref<4x64xf32, #tpu.memory_space<vmem>>, %arg5: memref<1x64xf32, #tpu.memory_space<vmem>>, %arg6: memref<64x384xbf16, #tpu.memory_space<vmem>>, %arg7: memref<2x64xbf16, #tpu.memory_space<vmem>>, %arg8: memref<1x64xf32, #tpu.memory_space<vmem>>, %arg9: memref<16x64xf32, #tpu.memory_space<vmem>>, %arg10: memref<1x64xf32, #tpu.memory_space<vmem>>, %arg11: memref<64x32xbf16, #tpu.memory_space<vmem>>, %arg12: memref<1x32xf32, #tpu.memory_space<vmem>>, %arg13: memref<1x32xf32, #tpu.memory_space<vmem>>, %arg14: memref<32x64xbf16, #tpu.memory_space<vmem>>, %arg15: memref<1x64xf32, #tpu.memory_space<vmem>>, %arg16: memref<64x32xbf16, #tpu.memory_space<vmem>>, %arg17: memref<1x32xf32, #tpu.memory_space<vmem>>, %arg18: memref<1x8x32xf32, #tpu.memory_space<vmem>>, %arg19: memref<16x64xf32, #tpu.memory_space<vmem>>, %arg20: memref<3x64xf32, #tpu.memory_space<vmem>>, %arg21: memref<8x64xf32, #tpu.memory_space<vmem>>, %arg22: memref<8x64xf32, #tpu.memory_space<vmem>>, %arg23: memref<8x16xf32, #tpu.memory_space<vmem>>, %arg24: memref<8x16xf32, #tpu.memory_space<vmem>>, %arg25: memref<8x64xf32, #tpu.memory_space<vmem>>) attributes {dimension_semantics = [#tpu.dimension_semantics<parallel>, #tpu.dimension_semantics<arbitrary>], iteration_bounds = array<i64: 2, 2>, scalar_prefetch = 0 : i64, scratch_operands = 7 : i64, tpu.core_type = #tpu.core_type<tc>, window_params = [{transform_indices = @transform_0, window_bounds = array<i64: 1, 8, 32>}, {pipeline_mode = #tpu.pipeline_mode<synchronous>, transform_indices = @transform_1, window_bounds = array<i64: 32, 128>}, {pipeline_mode = #tpu.pipeline_mode<synchronous>, transform_indices = @transform_2, window_bounds = array<i64: 4, 64>}, {pipeline_mode = #tpu.pipeline_mode<synchronous>, transform_indices = @transform_3, window_bounds = array<i64: 1, 64>}, {pipeline_mode = #tpu.pipeline_mode<synchronous>, transform_indices = @transform_4, window_bounds = array<i64: 64, 384>}, {pipeline_mode = #tpu.pipeline_mode<synchronous>, transform_indices = @transform_5, window_bounds = array<i64: 2, 64>}, {pipeline_mode = #tpu.pipeline_mode<synchronous>, transform_indices = @transform_6, window_bounds = array<i64: 1, 64>}, {pipeline_mode = #tpu.pipeline_mode<synchronous>, transform_indices = @transform_7, window_bounds = array<i64: 16, 64>}, {pipeline_mode = #tpu.pipeline_mode<synchronous>, transform_indices = @transform_8, window_bounds = array<i64: 1, 64>}, {pipeline_mode = #tpu.pipeline_mode<synchronous>, transform_indices = @transform_9, window_bounds = array<i64: 64, 32>}, {pipeline_mode = #tpu.pipeline_mode<synchronous>, transform_indices = @transform_10, window_bounds = array<i64: 1, 32>}, {pipeline_mode = #tpu.pipeline_mode<synchronous>, transform_indices = @transform_11, window_bounds = array<i64: 1, 32>}, {pipeline_mode = #tpu.pipeline_mode<synchronous>, transform_indices = @transform_12, window_bounds = array<i64: 32, 64>}, {pipeline_mode = #tpu.pipeline_mode<synchronous>, transform_indices = @transform_13, window_bounds = array<i64: 1, 64>}, {pipeline_mode = #tpu.pipeline_mode<synchronous>, transform_indices = @transform_14, window_bounds = array<i64: 64, 32>}, {pipeline_mode = #tpu.pipeline_mode<synchronous>, transform_indices = @transform_15, window_bounds = array<i64: 1, 32>}, {transform_indices = @transform_16, window_bounds = array<i64: 1, 8, 32>}]} {
    %c0_i32 = arith.constant 0 : i32
    %0 = arith.cmpi eq, %arg1, %c0_i32 : i32
    %1 = arith.extui %0 : i1 to i32
    %c0_i32_0 = arith.constant 0 : i32
    %2 = arith.cmpi ne, %1, %c0_i32_0 : i32
    scf.if %2 {
      %cst_170 = arith.constant 0.000000e+00 : f32
      %432 = vector.broadcast %cst_170 : f32 to vector<16x64xf32>
      %c0_171 = arith.constant 0 : index
      %c0_172 = arith.constant 0 : index
      %433 = vector.load %arg19[%c0_171, %c0_172] : memref<16x64xf32, #tpu.memory_space<vmem>>, vector<16x64xf32>
      tpu.vector_store %arg19[%c0_171, %c0_172], %432 {strides = array<i32>} : memref<16x64xf32, #tpu.memory_space<vmem>>, vector<16x64xf32>,
      %cst_173 = arith.constant 0.000000e+00 : f32
      %434 = vector.broadcast %cst_173 : f32 to vector<3x64xf32>
      %c0_174 = arith.constant 0 : index
      %c0_175 = arith.constant 0 : index
      %435 = vector.load %arg20[%c0_174, %c0_175] : memref<3x64xf32, #tpu.memory_space<vmem>>, vector<3x64xf32>
      tpu.vector_store %arg20[%c0_174, %c0_175], %434 {strides = array<i32>} : memref<3x64xf32, #tpu.memory_space<vmem>>, vector<3x64xf32>,
    } else {
    }
    %c0 = arith.constant 0 : index
    %c0_1 = arith.constant 0 : index
    %c0_2 = arith.constant 0 : index
    %3 = vector.load %arg2[%c0, %c0_1, %c0_2] : memref<1x8x32xf32, #tpu.memory_space<vmem>>, vector<1x8x32xf32>
    %4 = vector.shape_cast %3 : vector<1x8x32xf32> to vector<8x32xf32>
    %5 = arith.truncf %4 : vector<8x32xf32> to vector<8x32xbf16>
    %c0_3 = arith.constant 0 : index
    %c0_4 = arith.constant 0 : index
    %6 = vector.load %arg3[%c0_3, %c0_4] : memref<32x128xbf16, #tpu.memory_space<vmem>>, vector<32x128xbf16>
    %cst = arith.constant dense<0.000000e+00> : vector<8x128xf32>
    %7 = tpu.matmul %5, %6, %cst {dimension_numbers = #tpu.dot_dimension_numbers<[1], [0], [0], [1], [0, 0, 1, 1], [], []>} : vector<8x32xbf16>, vector<32x128xbf16>, vector<8x128xf32> -> vector<8x128xf32>
    %8 = vector.extract_strided_slice %7 {offsets = [0, 0], sizes = [8, 64], strides = [1, 1]} : vector<8x128xf32> to vector<8x64xf32>
    %9 = vector.extract_strided_slice %7 {offsets = [0, 64], sizes = [8, 64], strides = [1, 1]} : vector<8x128xf32> to vector<8x64xf32>
    %c0_5 = arith.constant 0 : index
    %c0_6 = arith.constant 0 : index
    %10 = vector.load %arg4[%c0_5, %c0_6] : memref<4x64xf32, #tpu.memory_space<vmem>>, vector<4x64xf32>
    %c0_7 = arith.constant 0 : index
    %c0_8 = arith.constant 0 : index
    %11 = vector.load %arg20[%c0_7, %c0_8] : memref<3x64xf32, #tpu.memory_space<vmem>>, vector<3x64xf32>
    %12 = vector.extract_strided_slice %8 {offsets = [5, 0], sizes = [3, 64], strides = [1, 1]} : vector<8x64xf32> to vector<3x64xf32>
    %c0_9 = arith.constant 0 : index
    %c0_10 = arith.constant 0 : index
    %13 = vector.load %arg20[%c0_9, %c0_10] : memref<3x64xf32, #tpu.memory_space<vmem>>, vector<3x64xf32>
    tpu.vector_store %arg20[%c0_9, %c0_10], %12 {strides = array<i32>} : memref<3x64xf32, #tpu.memory_space<vmem>>, vector<3x64xf32>,
    %14 = tpu.concatenate %11, %8 in 0 : vector<3x64xf32>, vector<8x64xf32> -> vector<11x64xf32>
    %15 = vector.extract_strided_slice %10 {offsets = [3, 0], sizes = [1, 64], strides = [1, 1]} : vector<4x64xf32> to vector<1x64xf32>
    %16 = vector.broadcast %15 : vector<1x64xf32> to vector<8x64xf32>
    %17 = arith.mulf %8, %16 : vector<8x64xf32>
    %18 = vector.extract_strided_slice %14 {offsets = [0, 0], sizes = [8, 64], strides = [1, 1]} : vector<11x64xf32> to vector<8x64xf32>
    %19 = vector.extract_strided_slice %10 {offsets = [0, 0], sizes = [1, 64], strides = [1, 1]} : vector<4x64xf32> to vector<1x64xf32>
    %20 = vector.broadcast %19 : vector<1x64xf32> to vector<8x64xf32>
    %21 = arith.mulf %18, %20 : vector<8x64xf32>
    %22 = arith.addf %17, %21 : vector<8x64xf32>
    %23 = vector.extract_strided_slice %14 {offsets = [1, 0], sizes = [8, 64], strides = [1, 1]} : vector<11x64xf32> to vector<8x64xf32>
    %24 = vector.extract_strided_slice %10 {offsets = [1, 0], sizes = [1, 64], strides = [1, 1]} : vector<4x64xf32> to vector<1x64xf32>
    %25 = vector.broadcast %24 : vector<1x64xf32> to vector<8x64xf32>
    %26 = arith.mulf %23, %25 : vector<8x64xf32>
    %27 = arith.addf %22, %26 : vector<8x64xf32>
    %28 = vector.extract_strided_slice %14 {offsets = [2, 0], sizes = [8, 64], strides = [1, 1]} : vector<11x64xf32> to vector<8x64xf32>
    %29 = vector.extract_strided_slice %10 {offsets = [2, 0], sizes = [1, 64], strides = [1, 1]} : vector<4x64xf32> to vector<1x64xf32>
    %30 = vector.broadcast %29 : vector<1x64xf32> to vector<8x64xf32>
    %31 = arith.mulf %28, %30 : vector<8x64xf32>
    %32 = arith.addf %27, %31 : vector<8x64xf32>
    %c0_11 = arith.constant 0 : index
    %c0_12 = arith.constant 0 : index
    %33 = vector.load %arg5[%c0_11, %c0_12] : memref<1x64xf32, #tpu.memory_space<vmem>>, vector<1x64xf32>
    %34 = vector.broadcast %33 : vector<1x64xf32> to vector<8x64xf32>
    %35 = arith.addf %32, %34 : vector<8x64xf32>
    %cst_13 = arith.constant 0.000000e+00 : f32
    %36 = vector.broadcast %cst_13 : f32 to vector<8x64xf32>
    %37 = arith.subf %36, %35 : vector<8x64xf32>
    %38 = math.exp %37 : vector<8x64xf32>
    %cst_14 = arith.constant 1.000000e+00 : f32
    %39 = vector.broadcast %cst_14 : f32 to vector<8x64xf32>
    %40 = arith.addf %39, %38 : vector<8x64xf32>
    %41 = arith.divf %35, %40 : vector<8x64xf32>
    %42 = arith.truncf %41 : vector<8x64xf32> to vector<8x64xbf16>
    %c0_15 = arith.constant 0 : index
    %c0_16 = arith.constant 0 : index
    %43 = vector.load %arg6[%c0_15, %c0_16] : memref<64x384xbf16, #tpu.memory_space<vmem>>, vector<64x384xbf16>
    %cst_17 = arith.constant dense<0.000000e+00> : vector<8x384xf32>
    %44 = tpu.matmul %42, %43, %cst_17 {dimension_numbers = #tpu.dot_dimension_numbers<[1], [0], [0], [1], [0, 0, 1, 1], [], []>} : vector<8x64xbf16>, vector<64x384xbf16>, vector<8x384xf32> -> vector<8x384xf32>
    %45 = vector.extract_strided_slice %44 {offsets = [0, 0], sizes = [8, 2], strides = [1, 1]} : vector<8x384xf32> to vector<8x2xf32>
    %46 = vector.extract_strided_slice %44 {offsets = [0, 128], sizes = [8, 16], strides = [1, 1]} : vector<8x384xf32> to vector<8x16xf32>
    %47 = vector.extract_strided_slice %44 {offsets = [0, 256], sizes = [8, 16], strides = [1, 1]} : vector<8x384xf32> to vector<8x16xf32>
    %48 = arith.truncf %45 : vector<8x2xf32> to vector<8x2xbf16>
    %c0_18 = arith.constant 0 : index
    %c0_19 = arith.constant 0 : index
    %49 = vector.load %arg7[%c0_18, %c0_19] : memref<2x64xbf16, #tpu.memory_space<vmem>>, vector<2x64xbf16>
    %cst_20 = arith.constant dense<0.000000e+00> : vector<8x64xf32>
    %50 = tpu.matmul %48, %49, %cst_20 {dimension_numbers = #tpu.dot_dimension_numbers<[1], [0], [0], [1], [0, 0, 1, 1], [], []>} : vector<8x2xbf16>, vector<2x64xbf16>, vector<8x64xf32> -> vector<8x64xf32>
    %c0_21 = arith.constant 0 : index
    %c0_22 = arith.constant 0 : index
    %51 = vector.load %arg8[%c0_21, %c0_22] : memref<1x64xf32, #tpu.memory_space<vmem>>, vector<1x64xf32>
    %52 = vector.broadcast %51 : vector<1x64xf32> to vector<8x64xf32>
    %53 = arith.addf %50, %52 : vector<8x64xf32>
    %cst_23 = arith.constant 2.000000e+01 : f32
    %54 = vector.broadcast %cst_23 : f32 to vector<8x64xf32>
    %55 = arith.cmpf ogt, %53, %54 : vector<8x64xf32>
    %cst_24 = arith.constant 2.000000e+01 : f32
    %56 = vector.broadcast %cst_24 : f32 to vector<8x64xf32>
    %57 = arith.minimumf %53, %56 : vector<8x64xf32>
    %58 = math.exp %57 : vector<8x64xf32>
    %cst_25 = arith.constant 1.000000e+00 : f32
    %59 = vector.broadcast %cst_25 : f32 to vector<8x64xf32>
    %60 = arith.addf %59, %58 : vector<8x64xf32>
    %61 = math.log %60 : vector<8x64xf32>
    %62 = arith.select %55, %53, %61 : vector<8x64xi1>, vector<8x64xf32>
    %c0_26 = arith.constant 0 : index
    %c0_27 = arith.constant 0 : index
    %63 = vector.load %arg21[%c0_26, %c0_27] : memref<8x64xf32, #tpu.memory_space<vmem>>, vector<8x64xf32>
    tpu.vector_store %arg21[%c0_26, %c0_27], %62 {strides = array<i32>} : memref<8x64xf32, #tpu.memory_space<vmem>>, vector<8x64xf32>,
    %64 = arith.mulf %62, %41 : vector<8x64xf32>
    %c0_28 = arith.constant 0 : index
    %c0_29 = arith.constant 0 : index
    %65 = vector.load %arg22[%c0_28, %c0_29] : memref<8x64xf32, #tpu.memory_space<vmem>>, vector<8x64xf32>
    tpu.vector_store %arg22[%c0_28, %c0_29], %64 {strides = array<i32>} : memref<8x64xf32, #tpu.memory_space<vmem>>, vector<8x64xf32>,
    %c0_30 = arith.constant 0 : index
    %c0_31 = arith.constant 0 : index
    %66 = vector.load %arg23[%c0_30, %c0_31] : memref<8x16xf32, #tpu.memory_space<vmem>>, vector<8x16xf32>
    tpu.vector_store %arg23[%c0_30, %c0_31], %46 {strides = array<i32>} : memref<8x16xf32, #tpu.memory_space<vmem>>, vector<8x16xf32>,
    %c0_32 = arith.constant 0 : index
    %c0_33 = arith.constant 0 : index
    %67 = vector.load %arg24[%c0_32, %c0_33] : memref<8x16xf32, #tpu.memory_space<vmem>>, vector<8x16xf32>
    tpu.vector_store %arg24[%c0_32, %c0_33], %47 {strides = array<i32>} : memref<8x16xf32, #tpu.memory_space<vmem>>, vector<8x16xf32>,
    %c0_34 = arith.constant 0 : index
    %c0_35 = arith.constant 0 : index
    %68 = vector.load %arg9[%c0_34, %c0_35] : memref<16x64xf32, #tpu.memory_space<vmem>>, vector<16x64xf32>
    %69 = tpu.iota {dimensions = array<i32: 0>} : vector<16x16xi32>
    %70 = tpu.iota {dimensions = array<i32: 1>} : vector<16x16xi32>
    %71 = arith.cmpi eq, %69, %70 : vector<16x16xi32>
    %72 = arith.extui %71 : vector<16x16xi1> to vector<16x16xi32>
    %73 = arith.sitofp %72 : vector<16x16xi32> to vector<16x16xf32>
    %c0_36 = arith.constant 0 : index
    %c0_37 = arith.constant 0 : index
    %74 = vector.load %arg19[%c0_36, %c0_37] : memref<16x64xf32, #tpu.memory_space<vmem>>, vector<16x64xf32>
    %c0_i32_38 = arith.constant 0 : i32
    %c8_i32 = arith.constant 8 : i32
    %75 = arith.muli %c0_i32_38, %c8_i32 : i32
    %76 = tpu.assume_multiple %75, 8 : i32
    %c0_i32_39 = arith.constant 0 : i32
    %77 = arith.addi %76, %c0_i32_39 : i32
    %78 = arith.index_cast %77 : i32 to index
    %c0_40 = arith.constant 0 : index
    %79 = vector.load %arg21[%78, %c0_40] : memref<8x64xf32, #tpu.memory_space<vmem>>, vector<1x64xf32>
    %c0_i32_41 = arith.constant 0 : i32
    %80 = arith.addi %76, %c0_i32_41 : i32
    %81 = arith.index_cast %80 : i32 to index
    %c0_42 = arith.constant 0 : index
    %82 = vector.load %arg22[%81, %c0_42] : memref<8x64xf32, #tpu.memory_space<vmem>>, vector<1x64xf32>
    %c0_i32_43 = arith.constant 0 : i32
    %83 = arith.addi %76, %c0_i32_43 : i32
    %84 = arith.index_cast %83 : i32 to index
    %c0_44 = arith.constant 0 : index
    %85 = vector.load %arg23[%84, %c0_44] : memref<8x16xf32, #tpu.memory_space<vmem>>, vector<1x16xf32>
    %c0_i32_45 = arith.constant 0 : i32
    %86 = arith.addi %76, %c0_i32_45 : i32
    %87 = arith.index_cast %86 : i32 to index
    %c0_46 = arith.constant 0 : index
    %88 = vector.load %arg24[%87, %c0_46] : memref<8x16xf32, #tpu.memory_space<vmem>>, vector<1x16xf32>
    %89 = vector.broadcast %85 : vector<1x16xf32> to vector<16x16xf32>
    %90 = arith.mulf %73, %89 : vector<16x16xf32>
    %cst_47 = arith.constant dense<0.000000e+00> : vector<16xf32>
    %91 = vector.multi_reduction <add>, %90, %cst_47 [1] : vector<16x16xf32> to vector<16xf32>
    %92 = vector.shape_cast %91 : vector<16xf32> to vector<16x1xf32>
    %93 = vector.broadcast %88 : vector<1x16xf32> to vector<16x16xf32>
    %94 = arith.mulf %73, %93 : vector<16x16xf32>
    %cst_48 = arith.constant dense<0.000000e+00> : vector<16xf32>
    %95 = vector.multi_reduction <add>, %94, %cst_48 [1] : vector<16x16xf32> to vector<16xf32>
    %96 = vector.shape_cast %95 : vector<16xf32> to vector<16x1xf32>
    %97 = vector.broadcast %79 : vector<1x64xf32> to vector<16x64xf32>
    %98 = arith.mulf %97, %68 : vector<16x64xf32>
    %99 = math.exp %98 : vector<16x64xf32>
    %100 = arith.mulf %99, %74 : vector<16x64xf32>
    %101 = vector.broadcast %92 : vector<16x1xf32> to vector<16x64xf32>
    %102 = vector.broadcast %82 : vector<1x64xf32> to vector<16x64xf32>
    %103 = arith.mulf %101, %102 : vector<16x64xf32>
    %104 = arith.addf %100, %103 : vector<16x64xf32>
    %105 = vector.broadcast %96 : vector<16x1xf32> to vector<16x64xf32>
    %106 = arith.mulf %105, %104 : vector<16x64xf32>
    %cst_49 = arith.constant dense<0.000000e+00> : vector<64xf32>
    %107 = vector.multi_reduction <add>, %106, %cst_49 [0] : vector<16x64xf32> to vector<64xf32>
    %108 = vector.shape_cast %107 : vector<64xf32> to vector<1x64xf32>
    %c1_i32 = arith.constant 1 : i32
    %109 = arith.addi %76, %c1_i32 : i32
    %110 = arith.index_cast %109 : i32 to index
    %c0_50 = arith.constant 0 : index
    %111 = vector.load %arg21[%110, %c0_50] : memref<8x64xf32, #tpu.memory_space<vmem>>, vector<1x64xf32>
    %c1_i32_51 = arith.constant 1 : i32
    %112 = arith.addi %76, %c1_i32_51 : i32
    %113 = arith.index_cast %112 : i32 to index
    %c0_52 = arith.constant 0 : index
    %114 = vector.load %arg22[%113, %c0_52] : memref<8x64xf32, #tpu.memory_space<vmem>>, vector<1x64xf32>
    %c1_i32_53 = arith.constant 1 : i32
    %115 = arith.addi %76, %c1_i32_53 : i32
    %116 = arith.index_cast %115 : i32 to index
    %c0_54 = arith.constant 0 : index
    %117 = vector.load %arg23[%116, %c0_54] : memref<8x16xf32, #tpu.memory_space<vmem>>, vector<1x16xf32>
    %c1_i32_55 = arith.constant 1 : i32
    %118 = arith.addi %76, %c1_i32_55 : i32
    %119 = arith.index_cast %118 : i32 to index
    %c0_56 = arith.constant 0 : index
    %120 = vector.load %arg24[%119, %c0_56] : memref<8x16xf32, #tpu.memory_space<vmem>>, vector<1x16xf32>
    %121 = vector.broadcast %117 : vector<1x16xf32> to vector<16x16xf32>
    %122 = arith.mulf %73, %121 : vector<16x16xf32>
    %cst_57 = arith.constant dense<0.000000e+00> : vector<16xf32>
    %123 = vector.multi_reduction <add>, %122, %cst_57 [1] : vector<16x16xf32> to vector<16xf32>
    %124 = vector.shape_cast %123 : vector<16xf32> to vector<16x1xf32>
    %125 = vector.broadcast %120 : vector<1x16xf32> to vector<16x16xf32>
    %126 = arith.mulf %73, %125 : vector<16x16xf32>
    %cst_58 = arith.constant dense<0.000000e+00> : vector<16xf32>
    %127 = vector.multi_reduction <add>, %126, %cst_58 [1] : vector<16x16xf32> to vector<16xf32>
    %128 = vector.shape_cast %127 : vector<16xf32> to vector<16x1xf32>
    %129 = vector.broadcast %111 : vector<1x64xf32> to vector<16x64xf32>
    %130 = arith.mulf %129, %68 : vector<16x64xf32>
    %131 = math.exp %130 : vector<16x64xf32>
    %132 = arith.mulf %131, %104 : vector<16x64xf32>
    %133 = vector.broadcast %124 : vector<16x1xf32> to vector<16x64xf32>
    %134 = vector.broadcast %114 : vector<1x64xf32> to vector<16x64xf32>
    %135 = arith.mulf %133, %134 : vector<16x64xf32>
    %136 = arith.addf %132, %135 : vector<16x64xf32>
    %137 = vector.broadcast %128 : vector<16x1xf32> to vector<16x64xf32>
    %138 = arith.mulf %137, %136 : vector<16x64xf32>
    %cst_59 = arith.constant dense<0.000000e+00> : vector<64xf32>
    %139 = vector.multi_reduction <add>, %138, %cst_59 [0] : vector<16x64xf32> to vector<64xf32>
    %140 = vector.shape_cast %139 : vector<64xf32> to vector<1x64xf32>
    %c2_i32 = arith.constant 2 : i32
    %141 = arith.addi %76, %c2_i32 : i32
    %142 = arith.index_cast %141 : i32 to index
    %c0_60 = arith.constant 0 : index
    %143 = vector.load %arg21[%142, %c0_60] : memref<8x64xf32, #tpu.memory_space<vmem>>, vector<1x64xf32>
    %c2_i32_61 = arith.constant 2 : i32
    %144 = arith.addi %76, %c2_i32_61 : i32
    %145 = arith.index_cast %144 : i32 to index
    %c0_62 = arith.constant 0 : index
    %146 = vector.load %arg22[%145, %c0_62] : memref<8x64xf32, #tpu.memory_space<vmem>>, vector<1x64xf32>
    %c2_i32_63 = arith.constant 2 : i32
    %147 = arith.addi %76, %c2_i32_63 : i32
    %148 = arith.index_cast %147 : i32 to index
    %c0_64 = arith.constant 0 : index
    %149 = vector.load %arg23[%148, %c0_64] : memref<8x16xf32, #tpu.memory_space<vmem>>, vector<1x16xf32>
    %c2_i32_65 = arith.constant 2 : i32
    %150 = arith.addi %76, %c2_i32_65 : i32
    %151 = arith.index_cast %150 : i32 to index
    %c0_66 = arith.constant 0 : index
    %152 = vector.load %arg24[%151, %c0_66] : memref<8x16xf32, #tpu.memory_space<vmem>>, vector<1x16xf32>
    %153 = vector.broadcast %149 : vector<1x16xf32> to vector<16x16xf32>
    %154 = arith.mulf %73, %153 : vector<16x16xf32>
    %cst_67 = arith.constant dense<0.000000e+00> : vector<16xf32>
    %155 = vector.multi_reduction <add>, %154, %cst_67 [1] : vector<16x16xf32> to vector<16xf32>
    %156 = vector.shape_cast %155 : vector<16xf32> to vector<16x1xf32>
    %157 = vector.broadcast %152 : vector<1x16xf32> to vector<16x16xf32>
    %158 = arith.mulf %73, %157 : vector<16x16xf32>
    %cst_68 = arith.constant dense<0.000000e+00> : vector<16xf32>
    %159 = vector.multi_reduction <add>, %158, %cst_68 [1] : vector<16x16xf32> to vector<16xf32>
    %160 = vector.shape_cast %159 : vector<16xf32> to vector<16x1xf32>
    %161 = vector.broadcast %143 : vector<1x64xf32> to vector<16x64xf32>
    %162 = arith.mulf %161, %68 : vector<16x64xf32>
    %163 = math.exp %162 : vector<16x64xf32>
    %164 = arith.mulf %163, %136 : vector<16x64xf32>
    %165 = vector.broadcast %156 : vector<16x1xf32> to vector<16x64xf32>
    %166 = vector.broadcast %146 : vector<1x64xf32> to vector<16x64xf32>
    %167 = arith.mulf %165, %166 : vector<16x64xf32>
    %168 = arith.addf %164, %167 : vector<16x64xf32>
    %169 = vector.broadcast %160 : vector<16x1xf32> to vector<16x64xf32>
    %170 = arith.mulf %169, %168 : vector<16x64xf32>
    %cst_69 = arith.constant dense<0.000000e+00> : vector<64xf32>
    %171 = vector.multi_reduction <add>, %170, %cst_69 [0] : vector<16x64xf32> to vector<64xf32>
    %172 = vector.shape_cast %171 : vector<64xf32> to vector<1x64xf32>
    %c3_i32 = arith.constant 3 : i32
    %173 = arith.addi %76, %c3_i32 : i32
    %174 = arith.index_cast %173 : i32 to index
    %c0_70 = arith.constant 0 : index
    %175 = vector.load %arg21[%174, %c0_70] : memref<8x64xf32, #tpu.memory_space<vmem>>, vector<1x64xf32>
    %c3_i32_71 = arith.constant 3 : i32
    %176 = arith.addi %76, %c3_i32_71 : i32
    %177 = arith.index_cast %176 : i32 to index
    %c0_72 = arith.constant 0 : index
    %178 = vector.load %arg22[%177, %c0_72] : memref<8x64xf32, #tpu.memory_space<vmem>>, vector<1x64xf32>
    %c3_i32_73 = arith.constant 3 : i32
    %179 = arith.addi %76, %c3_i32_73 : i32
    %180 = arith.index_cast %179 : i32 to index
    %c0_74 = arith.constant 0 : index
    %181 = vector.load %arg23[%180, %c0_74] : memref<8x16xf32, #tpu.memory_space<vmem>>, vector<1x16xf32>
    %c3_i32_75 = arith.constant 3 : i32
    %182 = arith.addi %76, %c3_i32_75 : i32
    %183 = arith.index_cast %182 : i32 to index
    %c0_76 = arith.constant 0 : index
    %184 = vector.load %arg24[%183, %c0_76] : memref<8x16xf32, #tpu.memory_space<vmem>>, vector<1x16xf32>
    %185 = vector.broadcast %181 : vector<1x16xf32> to vector<16x16xf32>
    %186 = arith.mulf %73, %185 : vector<16x16xf32>
    %cst_77 = arith.constant dense<0.000000e+00> : vector<16xf32>
    %187 = vector.multi_reduction <add>, %186, %cst_77 [1] : vector<16x16xf32> to vector<16xf32>
    %188 = vector.shape_cast %187 : vector<16xf32> to vector<16x1xf32>
    %189 = vector.broadcast %184 : vector<1x16xf32> to vector<16x16xf32>
    %190 = arith.mulf %73, %189 : vector<16x16xf32>
    %cst_78 = arith.constant dense<0.000000e+00> : vector<16xf32>
    %191 = vector.multi_reduction <add>, %190, %cst_78 [1] : vector<16x16xf32> to vector<16xf32>
    %192 = vector.shape_cast %191 : vector<16xf32> to vector<16x1xf32>
    %193 = vector.broadcast %175 : vector<1x64xf32> to vector<16x64xf32>
    %194 = arith.mulf %193, %68 : vector<16x64xf32>
    %195 = math.exp %194 : vector<16x64xf32>
    %196 = arith.mulf %195, %168 : vector<16x64xf32>
    %197 = vector.broadcast %188 : vector<16x1xf32> to vector<16x64xf32>
    %198 = vector.broadcast %178 : vector<1x64xf32> to vector<16x64xf32>
    %199 = arith.mulf %197, %198 : vector<16x64xf32>
    %200 = arith.addf %196, %199 : vector<16x64xf32>
    %201 = vector.broadcast %192 : vector<16x1xf32> to vector<16x64xf32>
    %202 = arith.mulf %201, %200 : vector<16x64xf32>
    %cst_79 = arith.constant dense<0.000000e+00> : vector<64xf32>
    %203 = vector.multi_reduction <add>, %202, %cst_79 [0] : vector<16x64xf32> to vector<64xf32>
    %204 = vector.shape_cast %203 : vector<64xf32> to vector<1x64xf32>
    %c4_i32 = arith.constant 4 : i32
    %205 = arith.addi %76, %c4_i32 : i32
    %206 = arith.index_cast %205 : i32 to index
    %c0_80 = arith.constant 0 : index
    %207 = vector.load %arg21[%206, %c0_80] : memref<8x64xf32, #tpu.memory_space<vmem>>, vector<1x64xf32>
    %c4_i32_81 = arith.constant 4 : i32
    %208 = arith.addi %76, %c4_i32_81 : i32
    %209 = arith.index_cast %208 : i32 to index
    %c0_82 = arith.constant 0 : index
    %210 = vector.load %arg22[%209, %c0_82] : memref<8x64xf32, #tpu.memory_space<vmem>>, vector<1x64xf32>
    %c4_i32_83 = arith.constant 4 : i32
    %211 = arith.addi %76, %c4_i32_83 : i32
    %212 = arith.index_cast %211 : i32 to index
    %c0_84 = arith.constant 0 : index
    %213 = vector.load %arg23[%212, %c0_84] : memref<8x16xf32, #tpu.memory_space<vmem>>, vector<1x16xf32>
    %c4_i32_85 = arith.constant 4 : i32
    %214 = arith.addi %76, %c4_i32_85 : i32
    %215 = arith.index_cast %214 : i32 to index
    %c0_86 = arith.constant 0 : index
    %216 = vector.load %arg24[%215, %c0_86] : memref<8x16xf32, #tpu.memory_space<vmem>>, vector<1x16xf32>
    %217 = vector.broadcast %213 : vector<1x16xf32> to vector<16x16xf32>
    %218 = arith.mulf %73, %217 : vector<16x16xf32>
    %cst_87 = arith.constant dense<0.000000e+00> : vector<16xf32>
    %219 = vector.multi_reduction <add>, %218, %cst_87 [1] : vector<16x16xf32> to vector<16xf32>
    %220 = vector.shape_cast %219 : vector<16xf32> to vector<16x1xf32>
    %221 = vector.broadcast %216 : vector<1x16xf32> to vector<16x16xf32>
    %222 = arith.mulf %73, %221 : vector<16x16xf32>
    %cst_88 = arith.constant dense<0.000000e+00> : vector<16xf32>
    %223 = vector.multi_reduction <add>, %222, %cst_88 [1] : vector<16x16xf32> to vector<16xf32>
    %224 = vector.shape_cast %223 : vector<16xf32> to vector<16x1xf32>
    %225 = vector.broadcast %207 : vector<1x64xf32> to vector<16x64xf32>
    %226 = arith.mulf %225, %68 : vector<16x64xf32>
    %227 = math.exp %226 : vector<16x64xf32>
    %228 = arith.mulf %227, %200 : vector<16x64xf32>
    %229 = vector.broadcast %220 : vector<16x1xf32> to vector<16x64xf32>
    %230 = vector.broadcast %210 : vector<1x64xf32> to vector<16x64xf32>
    %231 = arith.mulf %229, %230 : vector<16x64xf32>
    %232 = arith.addf %228, %231 : vector<16x64xf32>
    %233 = vector.broadcast %224 : vector<16x1xf32> to vector<16x64xf32>
    %234 = arith.mulf %233, %232 : vector<16x64xf32>
    %cst_89 = arith.constant dense<0.000000e+00> : vector<64xf32>
    %235 = vector.multi_reduction <add>, %234, %cst_89 [0] : vector<16x64xf32> to vector<64xf32>
    %236 = vector.shape_cast %235 : vector<64xf32> to vector<1x64xf32>
    %c5_i32 = arith.constant 5 : i32
    %237 = arith.addi %76, %c5_i32 : i32
    %238 = arith.index_cast %237 : i32 to index
    %c0_90 = arith.constant 0 : index
    %239 = vector.load %arg21[%238, %c0_90] : memref<8x64xf32, #tpu.memory_space<vmem>>, vector<1x64xf32>
    %c5_i32_91 = arith.constant 5 : i32
    %240 = arith.addi %76, %c5_i32_91 : i32
    %241 = arith.index_cast %240 : i32 to index
    %c0_92 = arith.constant 0 : index
    %242 = vector.load %arg22[%241, %c0_92] : memref<8x64xf32, #tpu.memory_space<vmem>>, vector<1x64xf32>
    %c5_i32_93 = arith.constant 5 : i32
    %243 = arith.addi %76, %c5_i32_93 : i32
    %244 = arith.index_cast %243 : i32 to index
    %c0_94 = arith.constant 0 : index
    %245 = vector.load %arg23[%244, %c0_94] : memref<8x16xf32, #tpu.memory_space<vmem>>, vector<1x16xf32>
    %c5_i32_95 = arith.constant 5 : i32
    %246 = arith.addi %76, %c5_i32_95 : i32
    %247 = arith.index_cast %246 : i32 to index
    %c0_96 = arith.constant 0 : index
    %248 = vector.load %arg24[%247, %c0_96] : memref<8x16xf32, #tpu.memory_space<vmem>>, vector<1x16xf32>
    %249 = vector.broadcast %245 : vector<1x16xf32> to vector<16x16xf32>
    %250 = arith.mulf %73, %249 : vector<16x16xf32>
    %cst_97 = arith.constant dense<0.000000e+00> : vector<16xf32>
    %251 = vector.multi_reduction <add>, %250, %cst_97 [1] : vector<16x16xf32> to vector<16xf32>
    %252 = vector.shape_cast %251 : vector<16xf32> to vector<16x1xf32>
    %253 = vector.broadcast %248 : vector<1x16xf32> to vector<16x16xf32>
    %254 = arith.mulf %73, %253 : vector<16x16xf32>
    %cst_98 = arith.constant dense<0.000000e+00> : vector<16xf32>
    %255 = vector.multi_reduction <add>, %254, %cst_98 [1] : vector<16x16xf32> to vector<16xf32>
    %256 = vector.shape_cast %255 : vector<16xf32> to vector<16x1xf32>
    %257 = vector.broadcast %239 : vector<1x64xf32> to vector<16x64xf32>
    %258 = arith.mulf %257, %68 : vector<16x64xf32>
    %259 = math.exp %258 : vector<16x64xf32>
    %260 = arith.mulf %259, %232 : vector<16x64xf32>
    %261 = vector.broadcast %252 : vector<16x1xf32> to vector<16x64xf32>
    %262 = vector.broadcast %242 : vector<1x64xf32> to vector<16x64xf32>
    %263 = arith.mulf %261, %262 : vector<16x64xf32>
    %264 = arith.addf %260, %263 : vector<16x64xf32>
    %265 = vector.broadcast %256 : vector<16x1xf32> to vector<16x64xf32>
    %266 = arith.mulf %265, %264 : vector<16x64xf32>
    %cst_99 = arith.constant dense<0.000000e+00> : vector<64xf32>
    %267 = vector.multi_reduction <add>, %266, %cst_99 [0] : vector<16x64xf32> to vector<64xf32>
    %268 = vector.shape_cast %267 : vector<64xf32> to vector<1x64xf32>
    %c6_i32 = arith.constant 6 : i32
    %269 = arith.addi %76, %c6_i32 : i32
    %270 = arith.index_cast %269 : i32 to index
    %c0_100 = arith.constant 0 : index
    %271 = vector.load %arg21[%270, %c0_100] : memref<8x64xf32, #tpu.memory_space<vmem>>, vector<1x64xf32>
    %c6_i32_101 = arith.constant 6 : i32
    %272 = arith.addi %76, %c6_i32_101 : i32
    %273 = arith.index_cast %272 : i32 to index
    %c0_102 = arith.constant 0 : index
    %274 = vector.load %arg22[%273, %c0_102] : memref<8x64xf32, #tpu.memory_space<vmem>>, vector<1x64xf32>
    %c6_i32_103 = arith.constant 6 : i32
    %275 = arith.addi %76, %c6_i32_103 : i32
    %276 = arith.index_cast %275 : i32 to index
    %c0_104 = arith.constant 0 : index
    %277 = vector.load %arg23[%276, %c0_104] : memref<8x16xf32, #tpu.memory_space<vmem>>, vector<1x16xf32>
    %c6_i32_105 = arith.constant 6 : i32
    %278 = arith.addi %76, %c6_i32_105 : i32
    %279 = arith.index_cast %278 : i32 to index
    %c0_106 = arith.constant 0 : index
    %280 = vector.load %arg24[%279, %c0_106] : memref<8x16xf32, #tpu.memory_space<vmem>>, vector<1x16xf32>
    %281 = vector.broadcast %277 : vector<1x16xf32> to vector<16x16xf32>
    %282 = arith.mulf %73, %281 : vector<16x16xf32>
    %cst_107 = arith.constant dense<0.000000e+00> : vector<16xf32>
    %283 = vector.multi_reduction <add>, %282, %cst_107 [1] : vector<16x16xf32> to vector<16xf32>
    %284 = vector.shape_cast %283 : vector<16xf32> to vector<16x1xf32>
    %285 = vector.broadcast %280 : vector<1x16xf32> to vector<16x16xf32>
    %286 = arith.mulf %73, %285 : vector<16x16xf32>
    %cst_108 = arith.constant dense<0.000000e+00> : vector<16xf32>
    %287 = vector.multi_reduction <add>, %286, %cst_108 [1] : vector<16x16xf32> to vector<16xf32>
    %288 = vector.shape_cast %287 : vector<16xf32> to vector<16x1xf32>
    %289 = vector.broadcast %271 : vector<1x64xf32> to vector<16x64xf32>
    %290 = arith.mulf %289, %68 : vector<16x64xf32>
    %291 = math.exp %290 : vector<16x64xf32>
    %292 = arith.mulf %291, %264 : vector<16x64xf32>
    %293 = vector.broadcast %284 : vector<16x1xf32> to vector<16x64xf32>
    %294 = vector.broadcast %274 : vector<1x64xf32> to vector<16x64xf32>
    %295 = arith.mulf %293, %294 : vector<16x64xf32>
    %296 = arith.addf %292, %295 : vector<16x64xf32>
    %297 = vector.broadcast %288 : vector<16x1xf32> to vector<16x64xf32>
    %298 = arith.mulf %297, %296 : vector<16x64xf32>
    %cst_109 = arith.constant dense<0.000000e+00> : vector<64xf32>
    %299 = vector.multi_reduction <add>, %298, %cst_109 [0] : vector<16x64xf32> to vector<64xf32>
    %300 = vector.shape_cast %299 : vector<64xf32> to vector<1x64xf32>
    %c7_i32 = arith.constant 7 : i32
    %301 = arith.addi %76, %c7_i32 : i32
    %302 = arith.index_cast %301 : i32 to index
    %c0_110 = arith.constant 0 : index
    %303 = vector.load %arg21[%302, %c0_110] : memref<8x64xf32, #tpu.memory_space<vmem>>, vector<1x64xf32>
    %c7_i32_111 = arith.constant 7 : i32
    %304 = arith.addi %76, %c7_i32_111 : i32
    %305 = arith.index_cast %304 : i32 to index
    %c0_112 = arith.constant 0 : index
    %306 = vector.load %arg22[%305, %c0_112] : memref<8x64xf32, #tpu.memory_space<vmem>>, vector<1x64xf32>
    %c7_i32_113 = arith.constant 7 : i32
    %307 = arith.addi %76, %c7_i32_113 : i32
    %308 = arith.index_cast %307 : i32 to index
    %c0_114 = arith.constant 0 : index
    %309 = vector.load %arg23[%308, %c0_114] : memref<8x16xf32, #tpu.memory_space<vmem>>, vector<1x16xf32>
    %c7_i32_115 = arith.constant 7 : i32
    %310 = arith.addi %76, %c7_i32_115 : i32
    %311 = arith.index_cast %310 : i32 to index
    %c0_116 = arith.constant 0 : index
    %312 = vector.load %arg24[%311, %c0_116] : memref<8x16xf32, #tpu.memory_space<vmem>>, vector<1x16xf32>
    %313 = vector.broadcast %309 : vector<1x16xf32> to vector<16x16xf32>
    %314 = arith.mulf %73, %313 : vector<16x16xf32>
    %cst_117 = arith.constant dense<0.000000e+00> : vector<16xf32>
    %315 = vector.multi_reduction <add>, %314, %cst_117 [1] : vector<16x16xf32> to vector<16xf32>
    %316 = vector.shape_cast %315 : vector<16xf32> to vector<16x1xf32>
    %317 = vector.broadcast %312 : vector<1x16xf32> to vector<16x16xf32>
    %318 = arith.mulf %73, %317 : vector<16x16xf32>
    %cst_118 = arith.constant dense<0.000000e+00> : vector<16xf32>
    %319 = vector.multi_reduction <add>, %318, %cst_118 [1] : vector<16x16xf32> to vector<16xf32>
    %320 = vector.shape_cast %319 : vector<16xf32> to vector<16x1xf32>
    %321 = vector.broadcast %303 : vector<1x64xf32> to vector<16x64xf32>
    %322 = arith.mulf %321, %68 : vector<16x64xf32>
    %323 = math.exp %322 : vector<16x64xf32>
    %324 = arith.mulf %323, %296 : vector<16x64xf32>
    %325 = vector.broadcast %316 : vector<16x1xf32> to vector<16x64xf32>
    %326 = vector.broadcast %306 : vector<1x64xf32> to vector<16x64xf32>
    %327 = arith.mulf %325, %326 : vector<16x64xf32>
    %328 = arith.addf %324, %327 : vector<16x64xf32>
    %329 = vector.broadcast %320 : vector<16x1xf32> to vector<16x64xf32>
    %330 = arith.mulf %329, %328 : vector<16x64xf32>
    %cst_119 = arith.constant dense<0.000000e+00> : vector<64xf32>
    %331 = vector.multi_reduction <add>, %330, %cst_119 [0] : vector<16x64xf32> to vector<64xf32>
    %332 = vector.shape_cast %331 : vector<64xf32> to vector<1x64xf32>
    %333 = tpu.concatenate %108, %140, %172, %204, %236, %268, %300, %332 in 0 : vector<1x64xf32>, vector<1x64xf32>, vector<1x64xf32>, vector<1x64xf32>, vector<1x64xf32>, vector<1x64xf32>, vector<1x64xf32>, vector<1x64xf32> -> vector<8x64xf32>
    %334 = arith.index_cast %76 : i32 to index
    %c0_120 = arith.constant 0 : index
    %335 = vector.load %arg25[%334, %c0_120] : memref<8x64xf32, #tpu.memory_space<vmem>>, vector<8x64xf32>
    tpu.vector_store %arg25[%334, %c0_120], %333 {strides = array<i32>} : memref<8x64xf32, #tpu.memory_space<vmem>>, vector<8x64xf32>,
    %c1_i32_121 = arith.constant 1 : i32
    %c0_122 = arith.constant 0 : index
    %c0_123 = arith.constant 0 : index
    %336 = vector.load %arg19[%c0_122, %c0_123] : memref<16x64xf32, #tpu.memory_space<vmem>>, vector<16x64xf32>
    tpu.vector_store %arg19[%c0_122, %c0_123], %328 {strides = array<i32>} : memref<16x64xf32, #tpu.memory_space<vmem>>, vector<16x64xf32>,
    %c0_124 = arith.constant 0 : index
    %c0_125 = arith.constant 0 : index
    %337 = vector.load %arg25[%c0_124, %c0_125] : memref<8x64xf32, #tpu.memory_space<vmem>>, vector<8x64xf32>
    %c0_126 = arith.constant 0 : index
    %c0_127 = arith.constant 0 : index
    %338 = vector.load %arg10[%c0_126, %c0_127] : memref<1x64xf32, #tpu.memory_space<vmem>>, vector<1x64xf32>
    %339 = vector.broadcast %338 : vector<1x64xf32> to vector<8x64xf32>
    %340 = arith.mulf %41, %339 : vector<8x64xf32>
    %341 = arith.addf %337, %340 : vector<8x64xf32>
    %cst_128 = arith.constant 0.000000e+00 : f32
    %342 = vector.broadcast %cst_128 : f32 to vector<8x64xf32>
    %343 = arith.subf %342, %9 : vector<8x64xf32>
    %344 = math.exp %343 : vector<8x64xf32>
    %cst_129 = arith.constant 1.000000e+00 : f32
    %345 = vector.broadcast %cst_129 : f32 to vector<8x64xf32>
    %346 = arith.addf %345, %344 : vector<8x64xf32>
    %347 = arith.divf %9, %346 : vector<8x64xf32>
    %348 = arith.mulf %341, %347 : vector<8x64xf32>
    %349 = arith.truncf %348 : vector<8x64xf32> to vector<8x64xbf16>
    %c0_130 = arith.constant 0 : index
    %c0_131 = arith.constant 0 : index
    %350 = vector.load %arg11[%c0_130, %c0_131] : memref<64x32xbf16, #tpu.memory_space<vmem>>, vector<64x32xbf16>
    %cst_132 = arith.constant dense<0.000000e+00> : vector<8x32xf32>
    %351 = tpu.matmul %349, %350, %cst_132 {dimension_numbers = #tpu.dot_dimension_numbers<[1], [0], [0], [1], [0, 0, 1, 1], [], []>} : vector<8x64xbf16>, vector<64x32xbf16>, vector<8x32xf32> -> vector<8x32xf32>
    %cst_133 = arith.constant dense<0.000000e+00> : vector<8xf32>
    %352 = vector.multi_reduction <add>, %351, %cst_133 [1] : vector<8x32xf32> to vector<8xf32>
    %353 = vector.shape_cast %352 : vector<8xf32> to vector<8x1xf32>
    %cst_134 = arith.constant 3.200000e+01 : f32
    %354 = vector.broadcast %cst_134 : f32 to vector<8x1xf32>
    %355 = arith.divf %353, %354 : vector<8x1xf32>
    %356 = vector.broadcast %355 : vector<8x1xf32> to vector<8x32xf32>
    %357 = arith.subf %351, %356 : vector<8x32xf32>
    %358 = arith.mulf %357, %357 : vector<8x32xf32>
    %cst_135 = arith.constant dense<0.000000e+00> : vector<8xf32>
    %359 = vector.multi_reduction <add>, %358, %cst_135 [1] : vector<8x32xf32> to vector<8xf32>
    %360 = vector.shape_cast %359 : vector<8xf32> to vector<8x1xf32>
    %cst_136 = arith.constant 3.200000e+01 : f32
    %361 = vector.broadcast %cst_136 : f32 to vector<8x1xf32>
    %362 = arith.divf %360, %361 : vector<8x1xf32>
    %363 = vector.broadcast %355 : vector<8x1xf32> to vector<8x32xf32>
    %364 = arith.subf %351, %363 : vector<8x32xf32>
    %cst_137 = arith.constant 9.99999974E-6 : f32
    %365 = vector.broadcast %cst_137 : f32 to vector<8x1xf32>
    %366 = arith.addf %362, %365 : vector<8x1xf32>
    %367 = math.rsqrt %366 : vector<8x1xf32>
    %368 = vector.broadcast %367 : vector<8x1xf32> to vector<8x32xf32>
    %369 = arith.mulf %364, %368 : vector<8x32xf32>
    %c0_138 = arith.constant 0 : index
    %c0_139 = arith.constant 0 : index
    %370 = vector.load %arg12[%c0_138, %c0_139] : memref<1x32xf32, #tpu.memory_space<vmem>>, vector<1x32xf32>
    %371 = vector.broadcast %370 : vector<1x32xf32> to vector<8x32xf32>
    %372 = arith.mulf %369, %371 : vector<8x32xf32>
    %c0_140 = arith.constant 0 : index
    %c0_141 = arith.constant 0 : index
    %373 = vector.load %arg13[%c0_140, %c0_141] : memref<1x32xf32, #tpu.memory_space<vmem>>, vector<1x32xf32>
    %374 = vector.broadcast %373 : vector<1x32xf32> to vector<8x32xf32>
    %375 = arith.addf %372, %374 : vector<8x32xf32>
    %376 = arith.truncf %375 : vector<8x32xf32> to vector<8x32xbf16>
    %c0_142 = arith.constant 0 : index
    %c0_143 = arith.constant 0 : index
    %377 = vector.load %arg14[%c0_142, %c0_143] : memref<32x64xbf16, #tpu.memory_space<vmem>>, vector<32x64xbf16>
    %cst_144 = arith.constant dense<0.000000e+00> : vector<8x64xf32>
    %378 = tpu.matmul %376, %377, %cst_144 {dimension_numbers = #tpu.dot_dimension_numbers<[1], [0], [0], [1], [0, 0, 1, 1], [], []>} : vector<8x32xbf16>, vector<32x64xbf16>, vector<8x64xf32> -> vector<8x64xf32>
    %c0_145 = arith.constant 0 : index
    %c0_146 = arith.constant 0 : index
    %379 = vector.load %arg15[%c0_145, %c0_146] : memref<1x64xf32, #tpu.memory_space<vmem>>, vector<1x64xf32>
    %380 = vector.broadcast %379 : vector<1x64xf32> to vector<8x64xf32>
    %381 = arith.addf %378, %380 : vector<8x64xf32>
    %cst_147 = arith.constant 0.707106769 : f32
    %382 = vector.broadcast %cst_147 : f32 to vector<8x64xf32>
    %383 = arith.mulf %381, %382 : vector<8x64xf32>
    %cst_148 = arith.constant 0.000000e+00 : f32
    %384 = vector.broadcast %cst_148 : f32 to vector<8x64xf32>
    %385 = arith.cmpf oge, %383, %384 : vector<8x64xf32>
    %cst_149 = arith.constant 1.000000e+00 : f32
    %cst_150 = arith.constant -1.000000e+00 : f32
    %386 = vector.broadcast %cst_149 : f32 to vector<8x64xf32>
    %387 = vector.broadcast %cst_150 : f32 to vector<8x64xf32>
    %388 = arith.select %385, %386, %387 : vector<8x64xi1>, vector<8x64xf32>
    %389 = math.absf %383 : vector<8x64xf32>
    %cst_151 = arith.constant 0.327591091 : f32
    %390 = vector.broadcast %cst_151 : f32 to vector<8x64xf32>
    %391 = arith.mulf %390, %389 : vector<8x64xf32>
    %cst_152 = arith.constant 1.000000e+00 : f32
    %392 = vector.broadcast %cst_152 : f32 to vector<8x64xf32>
    %393 = arith.addf %392, %391 : vector<8x64xf32>
    %394 = tpu.reciprocal %393 : vector<8x64xf32> -> vector<8x64xf32>
    %cst_153 = arith.constant 1.06140542 : f32
    %395 = vector.broadcast %cst_153 : f32 to vector<8x64xf32>
    %396 = arith.mulf %395, %394 : vector<8x64xf32>
    %cst_154 = arith.constant -1.45315206 : f32
    %397 = vector.broadcast %cst_154 : f32 to vector<8x64xf32>
    %398 = arith.addf %396, %397 : vector<8x64xf32>
    %399 = arith.mulf %398, %394 : vector<8x64xf32>
    %cst_155 = arith.constant 1.42141378 : f32
    %400 = vector.broadcast %cst_155 : f32 to vector<8x64xf32>
    %401 = arith.addf %399, %400 : vector<8x64xf32>
    %402 = arith.mulf %401, %394 : vector<8x64xf32>
    %cst_156 = arith.constant -0.284496725 : f32
    %403 = vector.broadcast %cst_156 : f32 to vector<8x64xf32>
    %404 = arith.addf %402, %403 : vector<8x64xf32>
    %405 = arith.mulf %404, %394 : vector<8x64xf32>
    %cst_157 = arith.constant 0.254829586 : f32
    %406 = vector.broadcast %cst_157 : f32 to vector<8x64xf32>
    %407 = arith.addf %405, %406 : vector<8x64xf32>
    %408 = arith.mulf %407, %394 : vector<8x64xf32>
    %cst_158 = arith.constant 0.000000e+00 : f32
    %409 = vector.broadcast %cst_158 : f32 to vector<8x64xf32>
    %410 = arith.subf %409, %389 : vector<8x64xf32>
    %411 = arith.mulf %410, %389 : vector<8x64xf32>
    %412 = math.exp %411 : vector<8x64xf32>
    %413 = arith.mulf %408, %412 : vector<8x64xf32>
    %cst_159 = arith.constant 1.000000e+00 : f32
    %414 = vector.broadcast %cst_159 : f32 to vector<8x64xf32>
    %415 = arith.subf %414, %413 : vector<8x64xf32>
    %416 = arith.mulf %388, %415 : vector<8x64xf32>
    %cst_160 = arith.constant 5.000000e-01 : f32
    %417 = vector.broadcast %cst_160 : f32 to vector<8x64xf32>
    %418 = arith.mulf %417, %381 : vector<8x64xf32>
    %cst_161 = arith.constant 1.000000e+00 : f32
    %419 = vector.broadcast %cst_161 : f32 to vector<8x64xf32>
    %420 = arith.addf %419, %416 : vector<8x64xf32>
    %421 = arith.mulf %418, %420 : vector<8x64xf32>
    %422 = arith.truncf %421 : vector<8x64xf32> to vector<8x64xbf16>
    %c0_162 = arith.constant 0 : index
    %c0_163 = arith.constant 0 : index
    %423 = vector.load %arg16[%c0_162, %c0_163] : memref<64x32xbf16, #tpu.memory_space<vmem>>, vector<64x32xbf16>
    %cst_164 = arith.constant dense<0.000000e+00> : vector<8x32xf32>
    %424 = tpu.matmul %422, %423, %cst_164 {dimension_numbers = #tpu.dot_dimension_numbers<[1], [0], [0], [1], [0, 0, 1, 1], [], []>} : vector<8x64xbf16>, vector<64x32xbf16>, vector<8x32xf32> -> vector<8x32xf32>
    %c0_165 = arith.constant 0 : index
    %c0_166 = arith.constant 0 : index
    %425 = vector.load %arg17[%c0_165, %c0_166] : memref<1x32xf32, #tpu.memory_space<vmem>>, vector<1x32xf32>
    %426 = vector.broadcast %425 : vector<1x32xf32> to vector<8x32xf32>
    %427 = arith.addf %424, %426 : vector<8x32xf32>
    %428 = arith.addf %351, %427 : vector<8x32xf32>
    %c0_167 = arith.constant 0 : index
    %c0_168 = arith.constant 0 : index
    %c0_169 = arith.constant 0 : index
    %429 = vector.load %arg18[%c0_167, %c0_168, %c0_169] : memref<1x8x32xf32, #tpu.memory_space<vmem>>, vector<1x8x32xf32>
    %430 = vector.shape_cast %429 : vector<1x8x32xf32> to vector<8x32xf32>
    %431 = vector.shape_cast %428 : vector<8x32xf32> to vector<1x8x32xf32>
    tpu.vector_store %arg18[%c0_167, %c0_168, %c0_169], %431 {strides = array<i32>} : memref<1x8x32xf32, #tpu.memory_space<vmem>>, vector<1x8x32xf32>,
    return
  }
  func.func @transform_0(%arg0: i32, %arg1: i32) -> (i32, i32, i32) {
    %c0_i32 = arith.constant 0 : i32
    %c0_i32_0 = arith.constant 0 : i32
    return %arg0, %arg1, %c0_i32 : i32, i32, i32
  }
  func.func @transform_1(%arg0: i32, %arg1: i32) -> (i32, i32) {
    %c0_i32 = arith.constant 0 : i32
    %c0_i32_0 = arith.constant 0 : i32
    %c0_i32_1 = arith.constant 0 : i32
    return %c0_i32, %c0_i32_0 : i32, i32
  }
  func.func @transform_2(%arg0: i32, %arg1: i32) -> (i32, i32) {
    %c0_i32 = arith.constant 0 : i32
    %c0_i32_0 = arith.constant 0 : i32
    %c0_i32_1 = arith.constant 0 : i32
    return %c0_i32, %c0_i32_0 : i32, i32
  }
  func.func @transform_3(%arg0: i32, %arg1: i32) -> (i32, i32) {
    %c0_i32 = arith.constant 0 : i32
    %c0_i32_0 = arith.constant 0 : i32
    %c0_i32_1 = arith.constant 0 : i32
    return %c0_i32, %c0_i32_0 : i32, i32
  }
  func.func @transform_4(%arg0: i32, %arg1: i32) -> (i32, i32) {
    %c0_i32 = arith.constant 0 : i32
    %c0_i32_0 = arith.constant 0 : i32
    %c0_i32_1 = arith.constant 0 : i32
    return %c0_i32, %c0_i32_0 : i32, i32
  }
  func.func @transform_5(%arg0: i32, %arg1: i32) -> (i32, i32) {
    %c0_i32 = arith.constant 0 : i32
    %c0_i32_0 = arith.constant 0 : i32
    %c0_i32_1 = arith.constant 0 : i32
    return %c0_i32, %c0_i32_0 : i32, i32
  }
  func.func @transform_6(%arg0: i32, %arg1: i32) -> (i32, i32) {
    %c0_i32 = arith.constant 0 : i32
    %c0_i32_0 = arith.constant 0 : i32
    %c0_i32_1 = arith.constant 0 : i32
    return %c0_i32, %c0_i32_0 : i32, i32
  }
  func.func @transform_7(%arg0: i32, %arg1: i32) -> (i32, i32) {
    %c0_i32 = arith.constant 0 : i32
    %c0_i32_0 = arith.constant 0 : i32
    %c0_i32_1 = arith.constant 0 : i32
    return %c0_i32, %c0_i32_0 : i32, i32
  }
  func.func @transform_8(%arg0: i32, %arg1: i32) -> (i32, i32) {
    %c0_i32 = arith.constant 0 : i32
    %c0_i32_0 = arith.constant 0 : i32
    %c0_i32_1 = arith.constant 0 : i32
    return %c0_i32, %c0_i32_0 : i32, i32
  }
  func.func @transform_9(%arg0: i32, %arg1: i32) -> (i32, i32) {
    %c0_i32 = arith.constant 0 : i32
    %c0_i32_0 = arith.constant 0 : i32
    %c0_i32_1 = arith.constant 0 : i32
    return %c0_i32, %c0_i32_0 : i32, i32
  }
  func.func @transform_10(%arg0: i32, %arg1: i32) -> (i32, i32) {
    %c0_i32 = arith.constant 0 : i32
    %c0_i32_0 = arith.constant 0 : i32
    %c0_i32_1 = arith.constant 0 : i32
    return %c0_i32, %c0_i32_0 : i32, i32
  }
  func.func @transform_11(%arg0: i32, %arg1: i32) -> (i32, i32) {
    %c0_i32 = arith.constant 0 : i32
    %c0_i32_0 = arith.constant 0 : i32
    %c0_i32_1 = arith.constant 0 : i32
    return %c0_i32, %c0_i32_0 : i32, i32
  }
  func.func @transform_12(%arg0: i32, %arg1: i32) -> (i32, i32) {
    %c0_i32 = arith.constant 0 : i32
    %c0_i32_0 = arith.constant 0 : i32
    %c0_i32_1 = arith.constant 0 : i32
    return %c0_i32, %c0_i32_0 : i32, i32
  }
  func.func @transform_13(%arg0: i32, %arg1: i32) -> (i32, i32) {
    %c0_i32 = arith.constant 0 : i32
    %c0_i32_0 = arith.constant 0 : i32
    %c0_i32_1 = arith.constant 0 : i32
    return %c0_i32, %c0_i32_0 : i32, i32
  }
  func.func @transform_14(%arg0: i32, %arg1: i32) -> (i32, i32) {
    %c0_i32 = arith.constant 0 : i32
    %c0_i32_0 = arith.constant 0 : i32
    %c0_i32_1 = arith.constant 0 : i32
    return %c0_i32, %c0_i32_0 : i32, i32
  }
  func.func @transform_15(%arg0: i32, %arg1: i32) -> (i32, i32) {
    %c0_i32 = arith.constant 0 : i32
    %c0_i32_0 = arith.constant 0 : i32
    %c0_i32_1 = arith.constant 0 : i32
    return %c0_i32, %c0_i32_0 : i32, i32
  }
  func.func @transform_16(%arg0: i32, %arg1: i32) -> (i32, i32, i32) {
    %c0_i32 = arith.constant 0 : i32
    %c0_i32_0 = arith.constant 0 : i32
    return %arg0, %arg1, %c0_i32 : i32, i32, i32
  }
}

</mosaic_0001>

<llo_original>
// kernel: tpu_custom_call.1
$region0: #{tpu_custom_call.1}
  #allocation0 [shape = 'u32[]', space=smem, size = 0x4, offset = 0x4, fixed_abs, tag = 'smem constant byte address 0x4 - core index']
  #allocation1 [shape = 'u32[144,128]{1,0:T(1,128)}', space=vmem, size = 0x12000, scoped, tag = 'internal scratch']
  #allocation2 [shape = 'f32[16,64]{1,0:T(8,128)}', space=vmem, size = 0x2000, scoped, tag = 'scratch operand']
  #allocation3 [shape = 'f32[3,64]{1,0:T(4,128)}', space=vmem, size = 0x800, scoped, tag = 'scratch operand']
  #allocation4 [shape = 'f32[8,64]{1,0:T(8,128)}', space=vmem, size = 0x1000, scoped, tag = 'scratch operand']
  #allocation5 [shape = 'f32[8,64]{1,0:T(8,128)}', space=vmem, size = 0x1000, scoped, tag = 'scratch operand']
  #allocation6 [shape = 'f32[8,16]{1,0:T(8,128)}', space=vmem, size = 0x1000, scoped, tag = 'scratch operand']
  #allocation7 [shape = 'f32[8,16]{1,0:T(8,128)}', space=vmem, size = 0x1000, scoped, tag = 'scratch operand']
  #allocation8 [shape = 'f32[8,64]{1,0:T(8,128)}', space=vmem, size = 0x1000, scoped, tag = 'scratch operand']
  %s0 = inlined_call_operand.hbm [shape: f32[2,16,32], index: 0, kind: input, shape index: {}]
  %s1 = inlined_call_operand.hbm [shape: bf16[32,128], index: 1, kind: input, shape index: {}]
  %s2 = inlined_call_operand.hbm [shape: f32[4,64], index: 2, kind: input, shape index: {}]
  %s3 = inlined_call_operand.hbm [shape: f32[1,64], index: 3, kind: input, shape index: {}]
  %s4 = inlined_call_operand.hbm [shape: bf16[64,384], index: 4, kind: input, shape index: {}]
  %s5 = inlined_call_operand.hbm [shape: bf16[2,64], index: 5, kind: input, shape index: {}]
  %s6 = inlined_call_operand.hbm [shape: f32[1,64], index: 6, kind: input, shape index: {}]
  %s7 = inlined_call_operand.hbm [shape: f32[16,64], index: 7, kind: input, shape index: {}]
  %s8 = inlined_call_operand.hbm [shape: f32[1,64], index: 8, kind: input, shape index: {}]
  %s9 = inlined_call_operand.hbm [shape: bf16[64,32], index: 9, kind: input, shape index: {}]
  %s10 = inlined_call_operand.hbm [shape: f32[1,32], index: 10, kind: input, shape index: {}]
  %s11 = inlined_call_operand.hbm [shape: f32[1,32], index: 11, kind: input, shape index: {}]
  %s12 = inlined_call_operand.hbm [shape: bf16[32,64], index: 12, kind: input, shape index: {}]
  %s13 = inlined_call_operand.hbm [shape: f32[1,64], index: 13, kind: input, shape index: {}]
  %s14 = inlined_call_operand.hbm [shape: bf16[64,32], index: 14, kind: input, shape index: {}]
  %s15 = inlined_call_operand.hbm [shape: f32[1,32], index: 15, kind: input, shape index: {}]
  %s16 = inlined_call_operand.hbm [shape: f32[2,16,32], index: 16, kind: output, shape index: {}]
  %s17 = sld [smem:[#allocation0]]
  $region165: #{tpu_custom_call.1} parent=0
    _
  %s19 = ssub.s32 1, %s17
  %s20 = scalar_select 0, %s19, %s17
  $region1: #{tpu_custom_call.1} parent=0
    #allocation9 [shape = 'u8[8192]{0}', space=vmem, size = 0x2000, scoped, tag = 'input window, operand 0']
    #allocation10 [shape = 's32[2]{0}', space=sflag, size = 0x8, scoped, tag = 'scoped memory for tpu_custom_call.1']
    #allocation11 [shape = 's32[2]{0}', space=sflag, size = 0x8, scoped, tag = 'scoped memory for tpu_custom_call.1']
    #allocation12 [shape = 'u8[8192]{0}', space=vmem, size = 0x2000, scoped, tag = 'input window, operand 1, single buffered']
    #allocation13 [shape = 's32[1]{0}', space=sflag, size = 0x4, scoped, tag = 'scoped memory for tpu_custom_call.1']
    #allocation14 [shape = 'u8[2048]{0}', space=vmem, size = 0x800, scoped, tag = 'input window, operand 2, single buffered']
    #allocation15 [shape = 'u8[512]{0}', space=vmem, size = 0x400, scoped, tag = 'input window, operand 3, single buffered']
    #allocation16 [shape = 's32[1]{0}', space=sflag, size = 0x4, scoped, tag = 'scoped memory for tpu_custom_call.1']
    #allocation17 [shape = 'u8[49152]{0}', space=vmem, size = 0xc000, scoped, tag = 'input window, operand 4, single buffered']
    #allocation18 [shape = 'u8[512]{0}', space=vmem, size = 0x400, scoped, tag = 'input window, operand 5, single buffered']
    #allocation19 [shape = 's32[1]{0}', space=sflag, size = 0x4, scoped, tag = 'scoped memory for tpu_custom_call.1']
    #allocation20 [shape = 'u8[512]{0}', space=vmem, size = 0x400, scoped, tag = 'input window, operand 6, single buffered']
    #allocation21 [shape = 'u8[8192]{0}', space=vmem, size = 0x2000, scoped, tag = 'input window, operand 7, single buffered']
    #allocation22 [shape = 's32[1]{0}', space=sflag, size = 0x4, scoped, tag = 'scoped memory for tpu_custom_call.1']
    #allocation23 [shape = 'u8[512]{0}', space=vmem, size = 0x400, scoped, tag = 'input window, operand 8, single buffered']
    #allocation24 [shape = 'u8[16384]{0}', space=vmem, size = 0x4000, scoped, tag = 'input window, operand 9, single buffered']
    #allocation25 [shape = 's32[1]{0}', space=sflag, size = 0x4, scoped, tag = 'scoped memory for tpu_custom_call.1']
    #allocation26 [shape = 'u8[512]{0}', space=vmem, size = 0x400, scoped, tag = 'input window, operand 10, single buffered']
    #allocation27 [shape = 'u8[512]{0}', space=vmem, size = 0x400, scoped, tag = 'input window, operand 11, single buffered']
    #allocation28 [shape = 's32[1]{0}', space=sflag, size = 0x4, scoped, tag = 'scoped memory for tpu_custom_call.1']
    #allocation29 [shape = 'u8[8192]{0}', space=vmem, size = 0x2000, scoped, tag = 'input window, operand 12, single buffered']
    #allocation30 [shape = 'u8[512]{0}', space=vmem, size = 0x400, scoped, tag = 'input window, operand 13, single buffered']
    #allocation31 [shape = 's32[1]{0}', space=sflag, size = 0x4, scoped, tag = 'scoped memory for tpu_custom_call.1']
    #allocation32 [shape = 'u8[16384]{0}', space=vmem, size = 0x4000, scoped, tag = 'input window, operand 14, single buffered']
    #allocation33 [shape = 'u8[512]{0}', space=vmem, size = 0x400, scoped, tag = 'input window, operand 15, single buffered']
    #allocation34 [shape = 's32[1]{0}', space=sflag, size = 0x4, scoped, tag = 'scoped memory for tpu_custom_call.1']
    #allocation35 [shape = 'u8[8192]{0}', space=vmem, size = 0x2000, scoped, tag = 'output window, operand 0']
    %21 = vsyncpa [#allocation10], 0
    %s22 = scalar_lea.sflag [#allocation10], 1
    %23 = vsyncpa %s22, 0
    %24 = vsyncpa [#allocation13], 0
    %25 = vsyncpa [#allocation16], 0
    %26 = vsyncpa [#allocation19], 0
    %27 = vsyncpa [#allocation22], 0
    %28 = vsyncpa [#allocation25], 0
    %29 = vsyncpa [#allocation28], 0
    %30 = vsyncpa [#allocation31], 0
    %31 = vsyncpa [#allocation34], 0
    %32 = vsyncpa [#allocation11], 0
    %s33 = scalar_lea.sflag [#allocation11], 1
    %34 = vsyncpa %s33, 0
    loop: start=0, step=1, limit=6
    $region2: #{tpu_custom_call.1} parent=1 // loop_pre_header
      _
    $region3: #{tpu_custom_call.1} parent=1 // loop_header
      %s36 = sphi 0, %s40
      %p37 = scmp.ge.s32.totalorder %s36, 6
      %s43 = sphi 0, %s55
      %s44 = sphi 0, %s51
      %s45 = sphi 0, %s43
      %s46 = sphi 0, %s44
      %s47 = sphi 0, %s45
      %s48 = sphi 0, %s46
      %s60 = sphi 0, %s62
      %s63 = sphi 0, %s60
      %s64 = sphi 0, %s63
      %s80 = sphi 0, %s64
      %s84 = sphi 0, %s84
      %s86 = sphi 0, %s84
      %s87 = sphi 0, %s86
      %s101 = sphi 0, %s87
      %s105 = sphi 0, %s105
      %s107 = sphi 0, %s105
      %s108 = sphi 0, %s107
      %s122 = sphi 0, %s108
      %s126 = sphi 0, %s126
      %s128 = sphi 0, %s126
      %s129 = sphi 0, %s128
      %s143 = sphi 0, %s129
      %s147 = sphi 0, %s147
      %s149 = sphi 0, %s147
      %s150 = sphi 0, %s149
      %s164 = sphi 0, %s150
      %s168 = sphi 0, %s168
      %s170 = sphi 0, %s168
      %s171 = sphi 0, %s170
      %s185 = sphi 0, %s171
      %s189 = sphi 0, %s189
      %s191 = sphi 0, %s189
      %s192 = sphi 0, %s191
      %s206 = sphi 0, %s192
      %s210 = sphi 0, %s210
      %s212 = sphi 0, %s210
      %s213 = sphi 0, %s212
      %s227 = sphi 0, %s213
      %s231 = sphi 0, %s231
      %s233 = sphi 0, %s231
      %s234 = sphi 0, %s233
      %s248 = sphi 0, %s234
      %s252 = sphi 0, %s252
      %s254 = sphi 0, %s252
      %s255 = sphi 0, %s254
      %s269 = sphi 0, %s255
      %s273 = sphi 0, %s273
      %s275 = sphi 0, %s273
      %s276 = sphi 0, %s275
      %s290 = sphi 0, %s276
      %s294 = sphi 0, %s294
      %s296 = sphi 0, %s294
      %s297 = sphi 0, %s296
      %s311 = sphi 0, %s297
      %s315 = sphi 0, %s315
      %s317 = sphi 0, %s315
      %s318 = sphi 0, %s317
      %s332 = sphi 0, %s318
      %s336 = sphi 0, %s336
      %s338 = sphi 0, %s336
      %s339 = sphi 0, %s338
      %s353 = sphi 0, %s339
      %s357 = sphi 0, %s357
      %s359 = sphi 0, %s357
      %s360 = sphi 0, %s359
      %s374 = sphi 0, %s360
      %s378 = sphi 0, %s378
      %s380 = sphi 0, %s378
      %s381 = sphi 0, %s380
      %s395 = sphi 0, %s381
      %s403 = sphi 0, %s405
      %s406 = sphi 0, %s403
      %s407 = sphi 0, %s406
      %s423 = sphi 0, %s407
    $region4: #{tpu_custom_call.1} parent=1 // loop_header_branch
      %39 = sbr.rel (%p37) target = $region8
    $region5: #{tpu_custom_call.1} parent=1 // loop_body
      %s41 = ssub.s32 %s36, 1
      %s42 = ssub.s32 %s36, 2
      %s49 = sadd.s32 1, %s44
      %p50 = scmp.ge.s32.totalorder %s49, 2
      %s51 = scalar_select %p50, 0, %s49
      %s52 = sadd.s32 1, %s43
      %s53 = scalar_select %p50, %s52, %s43
      %p54 = scmp.ge.s32.totalorder %s53, 2
      %s55 = scalar_select %p54, 0, %s53
      %s56 = ssub.s32 %s43, %s55
      %s57 = ssub.s32 %s44, %s51
      %s58 = sor.u32 %s56, %s57
      %p59 = scmp.eq.s32.totalorder %s58, 0
      %s61 = sadd.s32 %s60, 1
      %s62 = scalar_select %p59, %s60, %s61
      %p65 = pneg %p59
      %p66 = scmp.eq.s32.totalorder %s36, 3
      %p67 = por %p65, %p66
      %p68 = scmp.ne.s32.totalorder %s60, %s63
      %p69 = scmp.eq.s32.totalorder %s36, 0
      %p70 = por %p68, %p69
      %p71 = scmp.ne.s32.totalorder %s60, %s63
      %p72 = scmp.eq.s32.totalorder %s41, 3
      %p73 = por %p71, %p72
      %p74 = scmp.ne.s32.totalorder %s63, %s64
      %p75 = scmp.eq.s32.totalorder %s41, 0
      %p76 = por %p74, %p75
      %p77 = scmp.ne.s32.totalorder %s63, %s64
      %p78 = scmp.eq.s32.totalorder %s42, 3
      %p79 = por %p77, %p78
      %p81 = scmp.ne.s32.totalorder %s64, %s80
      %p82 = scmp.eq.s32.totalorder %s42, 0
      %p83 = por %p81, %p82
      %s85 = sadd.s32 %s84, 1
      %p88 = scmp.eq.s32.totalorder %s36, 3
      %p89 = scmp.ne.s32.totalorder %s84, %s86
      %p90 = scmp.eq.s32.totalorder %s36, 0
      %p91 = por %p89, %p90
      %p92 = scmp.ne.s32.totalorder %s84, %s86
      %p93 = scmp.eq.s32.totalorder %s41, 3
      %p94 = por %p92, %p93
      %p95 = scmp.ne.s32.totalorder %s86, %s87
      %p96 = scmp.eq.s32.totalorder %s41, 0
      %p97 = por %p95, %p96
      %p98 = scmp.ne.s32.totalorder %s86, %s87
      %p99 = scmp.eq.s32.totalorder %s42, 3
      %p100 = por %p98, %p99
      %p102 = scmp.ne.s32.totalorder %s87, %s101
      %p103 = scmp.eq.s32.totalorder %s42, 0
      %p104 = por %p102, %p103
      %s106 = sadd.s32 %s105, 1
      %p109 = scmp.eq.s32.totalorder %s36, 3
      %p110 = scmp.ne.s32.totalorder %s105, %s107
      %p111 = scmp.eq.s32.totalorder %s36, 0
      %p112 = por %p110, %p111
      %p113 = scmp.ne.s32.totalorder %s105, %s107
      %p114 = scmp.eq.s32.totalorder %s41, 3
      %p115 = por %p113, %p114
      %p116 = scmp.ne.s32.totalorder %s107, %s108
      %p117 = scmp.eq.s32.totalorder %s41, 0
      %p118 = por %p116, %p117
      %p119 = scmp.ne.s32.totalorder %s107, %s108
      %p120 = scmp.eq.s32.totalorder %s42, 3
      %p121 = por %p119, %p120
      %p123 = scmp.ne.s32.totalorder %s108, %s122
      %p124 = scmp.eq.s32.totalorder %s42, 0
      %p125 = por %p123, %p124
      %s127 = sadd.s32 %s126, 1
      %p130 = scmp.eq.s32.totalorder %s36, 3
      %p131 = scmp.ne.s32.totalorder %s126, %s128
      %p132 = scmp.eq.s32.totalorder %s36, 0
      %p133 = por %p131, %p132
      %p134 = scmp.ne.s32.totalorder %s126, %s128
      %p135 = scmp.eq.s32.totalorder %s41, 3
      %p136 = por %p134, %p135
      %p137 = scmp.ne.s32.totalorder %s128, %s129
      %p138 = scmp.eq.s32.totalorder %s41, 0
      %p139 = por %p137, %p138
      %p140 = scmp.ne.s32.totalorder %s128, %s129
      %p141 = scmp.eq.s32.totalorder %s42, 3
      %p142 = por %p140, %p141
      %p144 = scmp.ne.s32.totalorder %s129, %s143
      %p145 = scmp.eq.s32.totalorder %s42, 0
      %p146 = por %p144, %p145
      %s148 = sadd.s32 %s147, 1
      %p151 = scmp.eq.s32.totalorder %s36, 3
      %p152 = scmp.ne.s32.totalorder %s147, %s149
      %p153 = scmp.eq.s32.totalorder %s36, 0
      %p154 = por %p152, %p153
      %p155 = scmp.ne.s32.totalorder %s147, %s149
      %p156 = scmp.eq.s32.totalorder %s41, 3
      %p157 = por %p155, %p156
      %p158 = scmp.ne.s32.totalorder %s149, %s150
      %p159 = scmp.eq.s32.totalorder %s41, 0
      %p160 = por %p158, %p159
      %p161 = scmp.ne.s32.totalorder %s149, %s150
      %p162 = scmp.eq.s32.totalorder %s42, 3
      %p163 = por %p161, %p162
      %p165 = scmp.ne.s32.totalorder %s150, %s164
      %p166 = scmp.eq.s32.totalorder %s42, 0
      %p167 = por %p165, %p166
      %s169 = sadd.s32 %s168, 1
      %p172 = scmp.eq.s32.totalorder %s36, 3
      %p173 = scmp.ne.s32.totalorder %s168, %s170
      %p174 = scmp.eq.s32.totalorder %s36, 0
      %p175 = por %p173, %p174
      %p176 = scmp.ne.s32.totalorder %s168, %s170
      %p177 = scmp.eq.s32.totalorder %s41, 3
      %p178 = por %p176, %p177
      %p179 = scmp.ne.s32.totalorder %s170, %s171
      %p180 = scmp.eq.s32.totalorder %s41, 0
      %p181 = por %p179, %p180
      %p182 = scmp.ne.s32.totalorder %s170, %s171
      %p183 = scmp.eq.s32.totalorder %s42, 3
      %p184 = por %p182, %p183
      %p186 = scmp.ne.s32.totalorder %s171, %s185
      %p187 = scmp.eq.s32.totalorder %s42, 0
      %p188 = por %p186, %p187
      %s190 = sadd.s32 %s189, 1
      %p193 = scmp.eq.s32.totalorder %s36, 3
      %p194 = scmp.ne.s32.totalorder %s189, %s191
      %p195 = scmp.eq.s32.totalorder %s36, 0
      %p196 = por %p194, %p195
      %p197 = scmp.ne.s32.totalorder %s189, %s191
      %p198 = scmp.eq.s32.totalorder %s41, 3
      %p199 = por %p197, %p198
      %p200 = scmp.ne.s32.totalorder %s191, %s192
      %p201 = scmp.eq.s32.totalorder %s41, 0
      %p202 = por %p200, %p201
      %p203 = scmp.ne.s32.totalorder %s191, %s192
      %p204 = scmp.eq.s32.totalorder %s42, 3
      %p205 = por %p203, %p204
      %p207 = scmp.ne.s32.totalorder %s192, %s206
      %p208 = scmp.eq.s32.totalorder %s42, 0
      %p209 = por %p207, %p208
      %s211 = sadd.s32 %s210, 1
      %p214 = scmp.eq.s32.totalorder %s36, 3
      %p215 = scmp.ne.s32.totalorder %s210, %s212
      %p216 = scmp.eq.s32.totalorder %s36, 0
      %p217 = por %p215, %p216
      %p218 = scmp.ne.s32.totalorder %s210, %s212
      %p219 = scmp.eq.s32.totalorder %s41, 3
      %p220 = por %p218, %p219
      %p221 = scmp.ne.s32.totalorder %s212, %s213
      %p222 = scmp.eq.s32.totalorder %s41, 0
      %p223 = por %p221, %p222
      %p224 = scmp.ne.s32.totalorder %s212, %s213
      %p225 = scmp.eq.s32.totalorder %s42, 3
      %p226 = por %p224, %p225
      %p228 = scmp.ne.s32.totalorder %s213, %s227
      %p229 = scmp.eq.s32.totalorder %s42, 0
      %p230 = por %p228, %p229
      %s232 = sadd.s32 %s231, 1
      %p235 = scmp.eq.s32.totalorder %s36, 3
      %p236 = scmp.ne.s32.totalorder %s231, %s233
      %p237 = scmp.eq.s32.totalorder %s36, 0
      %p238 = por %p236, %p237
      %p239 = scmp.ne.s32.totalorder %s231, %s233
      %p240 = scmp.eq.s32.totalorder %s41, 3
      %p241 = por %p239, %p240
      %p242 = scmp.ne.s32.totalorder %s233, %s234
      %p243 = scmp.eq.s32.totalorder %s41, 0
      %p244 = por %p242, %p243
      %p245 = scmp.ne.s32.totalorder %s233, %s234
      %p246 = scmp.eq.s32.totalorder %s42, 3
      %p247 = por %p245, %p246
      %p249 = scmp.ne.s32.totalorder %s234, %s248
      %p250 = scmp.eq.s32.totalorder %s42, 0
      %p251 = por %p249, %p250
      %s253 = sadd.s32 %s252, 1
      %p256 = scmp.eq.s32.totalorder %s36, 3
      %p257 = scmp.ne.s32.totalorder %s252, %s254
      %p258 = scmp.eq.s32.totalorder %s36, 0
      %p259 = por %p257, %p258
      %p260 = scmp.ne.s32.totalorder %s252, %s254
      %p261 = scmp.eq.s32.totalorder %s41, 3
      %p262 = por %p260, %p261
      %p263 = scmp.ne.s32.totalorder %s254, %s255
      %p264 = scmp.eq.s32.totalorder %s41, 0
      %p265 = por %p263, %p264
      %p266 = scmp.ne.s32.totalorder %s254, %s255
      %p267 = scmp.eq.s32.totalorder %s42, 3
      %p268 = por %p266, %p267
      %p270 = scmp.ne.s32.totalorder %s255, %s269
      %p271 = scmp.eq.s32.totalorder %s42, 0
      %p272 = por %p270, %p271
      %s274 = sadd.s32 %s273, 1
      %p277 = scmp.eq.s32.totalorder %s36, 3
      %p278 = scmp.ne.s32.totalorder %s273, %s275
      %p279 = scmp.eq.s32.totalorder %s36, 0
      %p280 = por %p278, %p279
      %p281 = scmp.ne.s32.totalorder %s273, %s275
      %p282 = scmp.eq.s32.totalorder %s41, 3
      %p283 = por %p281, %p282
      %p284 = scmp.ne.s32.totalorder %s275, %s276
      %p285 = scmp.eq.s32.totalorder %s41, 0
      %p286 = por %p284, %p285
      %p287 = scmp.ne.s32.totalorder %s275, %s276
      %p288 = scmp.eq.s32.totalorder %s42, 3
      %p289 = por %p287, %p288
      %p291 = scmp.ne.s32.totalorder %s276, %s290
      %p292 = scmp.eq.s32.totalorder %s42, 0
      %p293 = por %p291, %p292
      %s295 = sadd.s32 %s294, 1
      %p298 = scmp.eq.s32.totalorder %s36, 3
      %p299 = scmp.ne.s32.totalorder %s294, %s296
      %p300 = scmp.eq.s32.totalorder %s36, 0
      %p301 = por %p299, %p300
      %p302 = scmp.ne.s32.totalorder %s294, %s296
      %p303 = scmp.eq.s32.totalorder %s41, 3
      %p304 = por %p302, %p303
      %p305 = scmp.ne.s32.totalorder %s296, %s297
      %p306 = scmp.eq.s32.totalorder %s41, 0
      %p307 = por %p305, %p306
      %p308 = scmp.ne.s32.totalorder %s296, %s297
      %p309 = scmp.eq.s32.totalorder %s42, 3
      %p310 = por %p308, %p309
      %p312 = scmp.ne.s32.totalorder %s297, %s311
      %p313 = scmp.eq.s32.totalorder %s42, 0
      %p314 = por %p312, %p313
      %s316 = sadd.s32 %s315, 1
      %p319 = scmp.eq.s32.totalorder %s36, 3
      %p320 = scmp.ne.s32.totalorder %s315, %s317
      %p321 = scmp.eq.s32.totalorder %s36, 0
      %p322 = por %p320, %p321
      %p323 = scmp.ne.s32.totalorder %s315, %s317
      %p324 = scmp.eq.s32.totalorder %s41, 3
      %p325 = por %p323, %p324
      %p326 = scmp.ne.s32.totalorder %s317, %s318
      %p327 = scmp.eq.s32.totalorder %s41, 0
      %p328 = por %p326, %p327
      %p329 = scmp.ne.s32.totalorder %s317, %s318
      %p330 = scmp.eq.s32.totalorder %s42, 3
      %p331 = por %p329, %p330
      %p333 = scmp.ne.s32.totalorder %s318, %s332
      %p334 = scmp.eq.s32.totalorder %s42, 0
      %p335 = por %p333, %p334
      %s337 = sadd.s32 %s336, 1
      %p340 = scmp.eq.s32.totalorder %s36, 3
      %p341 = scmp.ne.s32.totalorder %s336, %s338
      %p342 = scmp.eq.s32.totalorder %s36, 0
      %p343 = por %p341, %p342
      %p344 = scmp.ne.s32.totalorder %s336, %s338
      %p345 = scmp.eq.s32.totalorder %s41, 3
      %p346 = por %p344, %p345
      %p347 = scmp.ne.s32.totalorder %s338, %s339
      %p348 = scmp.eq.s32.totalorder %s41, 0
      %p349 = por %p347, %p348
      %p350 = scmp.ne.s32.totalorder %s338, %s339
      %p351 = scmp.eq.s32.totalorder %s42, 3
      %p352 = por %p350, %p351
      %p354 = scmp.ne.s32.totalorder %s339, %s353
      %p355 = scmp.eq.s32.totalorder %s42, 0
      %p356 = por %p354, %p355
      %s358 = sadd.s32 %s357, 1
      %p361 = scmp.eq.s32.totalorder %s36, 3
      %p362 = scmp.ne.s32.totalorder %s357, %s359
      %p363 = scmp.eq.s32.totalorder %s36, 0
      %p364 = por %p362, %p363
      %p365 = scmp.ne.s32.totalorder %s357, %s359
      %p366 = scmp.eq.s32.totalorder %s41, 3
      %p367 = por %p365, %p366
      %p368 = scmp.ne.s32.totalorder %s359, %s360
      %p369 = scmp.eq.s32.totalorder %s41, 0
      %p370 = por %p368, %p369
      %p371 = scmp.ne.s32.totalorder %s359, %s360
      %p372 = scmp.eq.s32.totalorder %s42, 3
      %p373 = por %p371, %p372
      %p375 = scmp.ne.s32.totalorder %s360, %s374
      %p376 = scmp.eq.s32.totalorder %s42, 0
      %p377 = por %p375, %p376
      %s379 = sadd.s32 %s378, 1
      %p382 = scmp.eq.s32.totalorder %s36, 3
      %p383 = scmp.ne.s32.totalorder %s378, %s380
      %p384 = scmp.eq.s32.totalorder %s36, 0
      %p385 = por %p383, %p384
      %p386 = scmp.ne.s32.totalorder %s378, %s380
      %p387 = scmp.eq.s32.totalorder %s41, 3
      %p388 = por %p386, %p387
      %p389 = scmp.ne.s32.totalorder %s380, %s381
      %p390 = scmp.eq.s32.totalorder %s41, 0
      %p391 = por %p389, %p390
      %p392 = scmp.ne.s32.totalorder %s380, %s381
      %p393 = scmp.eq.s32.totalorder %s42, 3
      %p394 = por %p392, %p393
      %p396 = scmp.ne.s32.totalorder %s381, %s395
      %p397 = scmp.eq.s32.totalorder %s42, 0
      %p398 = por %p396, %p397
      %s399 = ssub.s32 %s43, %s55
      %s400 = ssub.s32 %s44, %s51
      %s401 = sor.u32 %s399, %s400
      %p402 = scmp.eq.s32.totalorder %s401, 0
      %s404 = sadd.s32 %s403, 1
      %s405 = scalar_select %p402, %s403, %s404
      %p408 = pneg %p402
      %p409 = scmp.eq.s32.totalorder %s36, 3
      %p410 = por %p408, %p409
      %p411 = scmp.ne.s32.totalorder %s403, %s406
      %p412 = scmp.eq.s32.totalorder %s36, 0
      %p413 = por %p411, %p412
      %p414 = scmp.ne.s32.totalorder %s403, %s406
      %p415 = scmp.eq.s32.totalorder %s41, 3
      %p416 = por %p414, %p415
      %p417 = scmp.ne.s32.totalorder %s406, %s407
      %p418 = scmp.eq.s32.totalorder %s41, 0
      %p419 = por %p417, %p418
      %p420 = scmp.ne.s32.totalorder %s406, %s407
      %p421 = scmp.eq.s32.totalorder %s42, 3
      %p422 = por %p420, %p421
      %p424 = scmp.ne.s32.totalorder %s407, %s423
      %p425 = scmp.eq.s32.totalorder %s42, 0
      %p426 = por %p424, %p425
      %p427 = scmp.le.s32.totalorder 1, %s36
      %p428 = scmp.lt.s32.totalorder %s36, 5
      %p429 = pnand %p427, %p428
      %p430 = pneg %p429
      // Predicated region
      $region9: #{tpu_custom_call.1} parent=5 // pred_check
        _
      $region10: #{tpu_custom_call.1} parent=5 // pred_check_branch
        %432 = sbr.rel (%p429) target = $region12
      $region11: #{tpu_custom_call.1} parent=5 // pred_region
        %s433 = ssub.s32 %s36, 1
        // Predicated region
        $region13: #{tpu_custom_call.1} parent=11 // pred_check
          %p434 = pneg %p97
        $region14: #{tpu_custom_call.1} parent=11 // pred_check_branch
          %436 = sbr.rel (%p434) target = $region16
        $region15: #{tpu_custom_call.1} parent=11 // pred_region
          %s438 = ssub.s32 256, 256
          %439 = vsyncadd [#allocation13], %s438
          %s440 = sshll.u32 [#allocation12], 4
          %s441 = int_to_ptr.vmem [resolvable:$true] %s440
          %446 = dma.hbm_to_vmem [thread:$0]  %s1, 256, %s441, [#allocation13], 64, 64, 4
        $region16: #{tpu_custom_call.1} parent=11 // pred_fallthru
          _
        // Predicated region
        $region17: #{tpu_custom_call.1} parent=11 // pred_check
          %p447 = pneg %p118
        $region18: #{tpu_custom_call.1} parent=11 // pred_check_branch
          %449 = sbr.rel (%p447) target = $region20
        $region19: #{tpu_custom_call.1} parent=11 // pred_region
          %s451 = ssub.s32 64, 64
          %452 = vsyncadd [#allocation13], %s451
          %s454 = sshll.u32 [#allocation14], 4
          %s455 = int_to_ptr.vmem [resolvable:$true] %s454
          %457 = dma.hbm_to_vmem [thread:$0]  %s2, 64, %s455, [#allocation13]
        $region20: #{tpu_custom_call.1} parent=11 // pred_fallthru
          _
        // Predicated region
        $region21: #{tpu_custom_call.1} parent=11 // pred_check
          %p458 = pneg %p139
        $region22: #{tpu_custom_call.1} parent=11 // pred_check_branch
          %460 = sbr.rel (%p458) target = $region24
        $region23: #{tpu_custom_call.1} parent=11 // pred_region
          %s462 = ssub.s32 16, 16
          %463 = vsyncadd [#allocation16], %s462
          %s465 = sshll.u32 [#allocation15], 4
          %s466 = int_to_ptr.vmem [resolvable:$true] %s465
          %468 = dma.hbm_to_vmem [thread:$0]  %s3, 16, %s466, [#allocation16]
        $region24: #{tpu_custom_call.1} parent=11 // pred_fallthru
          _
        // Predicated region
        $region25: #{tpu_custom_call.1} parent=11 // pred_check
          %p469 = pneg %p160
        $region26: #{tpu_custom_call.1} parent=11 // pred_check_branch
          %471 = sbr.rel (%p469) target = $region28
        $region27: #{tpu_custom_call.1} parent=11 // pred_region
          %s473 = ssub.s32 1536, 1536
          %474 = vsyncadd [#allocation16], %s473
          %s475 = sshll.u32 [#allocation17], 4
          %s476 = int_to_ptr.vmem [resolvable:$true] %s475
          %481 = dma.hbm_to_vmem [thread:$0]  %s4, 1536, %s476, [#allocation16], 192, 192, 12
        $region28: #{tpu_custom_call.1} parent=11 // pred_fallthru
          _
        // Predicated region
        $region29: #{tpu_custom_call.1} parent=11 // pred_check
          %p482 = pneg %p181
        $region30: #{tpu_custom_call.1} parent=11 // pred_check_branch
          %484 = sbr.rel (%p482) target = $region32
        $region31: #{tpu_custom_call.1} parent=11 // pred_region
          %s486 = ssub.s32 16, 16
          %487 = vsyncadd [#allocation19], %s486
          %s489 = sshll.u32 [#allocation18], 4
          %s490 = int_to_ptr.vmem [resolvable:$true] %s489
          %492 = dma.hbm_to_vmem [thread:$0]  %s5, 16, %s490, [#allocation19]
        $region32: #{tpu_custom_call.1} parent=11 // pred_fallthru
          _
        // Predicated region
        $region33: #{tpu_custom_call.1} parent=11 // pred_check
          %p493 = pneg %p202
        $region34: #{tpu_custom_call.1} parent=11 // pred_check_branch
          %495 = sbr.rel (%p493) target = $region36
        $region35: #{tpu_custom_call.1} parent=11 // pred_region
          %s497 = ssub.s32 16, 16
          %498 = vsyncadd [#allocation19], %s497
          %s500 = sshll.u32 [#allocation20], 4
          %s501 = int_to_ptr.vmem [resolvable:$true] %s500
          %503 = dma.hbm_to_vmem [thread:$0]  %s6, 16, %s501, [#allocation19]
        $region36: #{tpu_custom_call.1} parent=11 // pred_fallthru
          _
        // Predicated region
        $region37: #{tpu_custom_call.1} parent=11 // pred_check
          %p504 = pneg %p223
        $region38: #{tpu_custom_call.1} parent=11 // pred_check_branch
          %506 = sbr.rel (%p504) target = $region40
        $region39: #{tpu_custom_call.1} parent=11 // pred_region
          %s508 = ssub.s32 256, 256
          %509 = vsyncadd [#allocation22], %s508
          %s510 = sshll.u32 [#allocation21], 4
          %s511 = int_to_ptr.vmem [resolvable:$true] %s510
          %516 = dma.hbm_to_vmem [thread:$0]  %s7, 256, %s511, [#allocation22], 128, 128, 8
        $region40: #{tpu_custom_call.1} parent=11 // pred_fallthru
          _
        // Predicated region
        $region41: #{tpu_custom_call.1} parent=11 // pred_check
          %p517 = pneg %p244
        $region42: #{tpu_custom_call.1} parent=11 // pred_check_branch
          %519 = sbr.rel (%p517) target = $region44
        $region43: #{tpu_custom_call.1} parent=11 // pred_region
          %s521 = ssub.s32 16, 16
          %522 = vsyncadd [#allocation22], %s521
          %s524 = sshll.u32 [#allocation23], 4
          %s525 = int_to_ptr.vmem [resolvable:$true] %s524
          %527 = dma.hbm_to_vmem [thread:$0]  %s8, 16, %s525, [#allocation22]
        $region44: #{tpu_custom_call.1} parent=11 // pred_fallthru
          _
        // Predicated region
        $region45: #{tpu_custom_call.1} parent=11 // pred_check
          %p528 = pneg %p265
        $region46: #{tpu_custom_call.1} parent=11 // pred_check_branch
          %530 = sbr.rel (%p528) target = $region48
        $region47: #{tpu_custom_call.1} parent=11 // pred_region
          %s532 = ssub.s32 512, 512
          %533 = vsyncadd [#allocation25], %s532
          %s534 = sshll.u32 [#allocation24], 4
          %s535 = int_to_ptr.vmem [resolvable:$true] %s534
          %540 = dma.hbm_to_vmem [thread:$0]  %s9, 512, %s535, [#allocation25], 64, 64, 4
        $region48: #{tpu_custom_call.1} parent=11 // pred_fallthru
          _
        // Predicated region
        $region49: #{tpu_custom_call.1} parent=11 // pred_check
          %p541 = pneg %p286
        $region50: #{tpu_custom_call.1} parent=11 // pred_check_branch
          %543 = sbr.rel (%p541) target = $region52
        $region51: #{tpu_custom_call.1} parent=11 // pred_region
          %s545 = ssub.s32 16, 16
          %546 = vsyncadd [#allocation25], %s545
          %s548 = sshll.u32 [#allocation26], 4
          %s549 = int_to_ptr.vmem [resolvable:$true] %s548
          %551 = dma.hbm_to_vmem [thread:$0]  %s10, 16, %s549, [#allocation25]
        $region52: #{tpu_custom_call.1} parent=11 // pred_fallthru
          _
        // Predicated region
        $region53: #{tpu_custom_call.1} parent=11 // pred_check
          %p552 = pneg %p307
        $region54: #{tpu_custom_call.1} parent=11 // pred_check_branch
          %554 = sbr.rel (%p552) target = $region56
        $region55: #{tpu_custom_call.1} parent=11 // pred_region
          %s556 = ssub.s32 16, 16
          %557 = vsyncadd [#allocation28], %s556
          %s559 = sshll.u32 [#allocation27], 4
          %s560 = int_to_ptr.vmem [resolvable:$true] %s559
          %562 = dma.hbm_to_vmem [thread:$0]  %s11, 16, %s560, [#allocation28]
        $region56: #{tpu_custom_call.1} parent=11 // pred_fallthru
          _
        // Predicated region
        $region57: #{tpu_custom_call.1} parent=11 // pred_check
          %p563 = pneg %p328
        $region58: #{tpu_custom_call.1} parent=11 // pred_check_branch
          %565 = sbr.rel (%p563) target = $region60
        $region59: #{tpu_custom_call.1} parent=11 // pred_region
          %s567 = ssub.s32 256, 256
          %568 = vsyncadd [#allocation28], %s567
          %s569 = sshll.u32 [#allocation29], 4
          %s570 = int_to_ptr.vmem [resolvable:$true] %s569
          %575 = dma.hbm_to_vmem [thread:$0]  %s12, 256, %s570, [#allocation28], 64, 64, 4
        $region60: #{tpu_custom_call.1} parent=11 // pred_fallthru
          _
        // Predicated region
        $region61: #{tpu_custom_call.1} parent=11 // pred_check
          %p576 = pneg %p349
        $region62: #{tpu_custom_call.1} parent=11 // pred_check_branch
          %578 = sbr.rel (%p576) target = $region64
        $region63: #{tpu_custom_call.1} parent=11 // pred_region
          %s580 = ssub.s32 16, 16
          %581 = vsyncadd [#allocation31], %s580
          %s583 = sshll.u32 [#allocation30], 4
          %s584 = int_to_ptr.vmem [resolvable:$true] %s583
          %586 = dma.hbm_to_vmem [thread:$0]  %s13, 16, %s584, [#allocation31]
        $region64: #{tpu_custom_call.1} parent=11 // pred_fallthru
          _
        // Predicated region
        $region65: #{tpu_custom_call.1} parent=11 // pred_check
          %p587 = pneg %p370
        $region66: #{tpu_custom_call.1} parent=11 // pred_check_branch
          %589 = sbr.rel (%p587) target = $region68
        $region67: #{tpu_custom_call.1} parent=11 // pred_region
          %s591 = ssub.s32 512, 512
          %592 = vsyncadd [#allocation31], %s591
          %s593 = sshll.u32 [#allocation32], 4
          %s594 = int_to_ptr.vmem [resolvable:$true] %s593
          %599 = dma.hbm_to_vmem [thread:$0]  %s14, 512, %s594, [#allocation31], 64, 64, 4
        $region68: #{tpu_custom_call.1} parent=11 // pred_fallthru
          _
        // Predicated region
        $region69: #{tpu_custom_call.1} parent=11 // pred_check
          %p600 = pneg %p391
        $region70: #{tpu_custom_call.1} parent=11 // pred_check_branch
          %602 = sbr.rel (%p600) target = $region72
        $region71: #{tpu_custom_call.1} parent=11 // pred_region
          %s604 = ssub.s32 16, 16
          %605 = vsyncadd [#allocation34], %s604
          %s607 = sshll.u32 [#allocation33], 4
          %s608 = int_to_ptr.vmem [resolvable:$true] %s607
          %610 = dma.hbm_to_vmem [thread:$0]  %s15, 16, %s608, [#allocation34]
        $region72: #{tpu_custom_call.1} parent=11 // pred_fallthru
          _
      $region12: #{tpu_custom_call.1} parent=5 // pred_fallthru
        _
      %p611 = scmp.lt.s32.totalorder %s36, 4
      // Predicated region
      $region73: #{tpu_custom_call.1} parent=5 // pred_check
        %p612 = pneg %p611
      $region74: #{tpu_custom_call.1} parent=5 // pred_check_branch
        %614 = sbr.rel (%p612) target = $region76
      $region75: #{tpu_custom_call.1} parent=5 // pred_region
        // Predicated region
        $region77: #{tpu_custom_call.1} parent=75 // pred_check
          %p615 = pneg %p70
        $region78: #{tpu_custom_call.1} parent=75 // pred_check_branch
          %617 = sbr.rel (%p615) target = $region80
        $region79: #{tpu_custom_call.1} parent=75 // pred_region
          %s618 = sand.u32 %s60, 1
          %s619 = scalar_lea.sflag [#allocation10], %s618
          %s620 = sand.u32 %s60, 1
          %s621 = smul.addr %s620, 8
          %s622 = scalar_lea.vmem [#allocation9], %s621
          %s624 = ssub.s32 128, 128
          %625 = vsyncadd %s619, %s624
          %s626 = smul.addr %s43, 2
          %s627 = sadd.s32 %s44, %s626
          %s628 = smul.addr %s627, 128
          %s629 = scalar_lea.hbm %s0, %s628
          %s631 = sshll.u32 %s622, 4
          %s632 = int_to_ptr.vmem [resolvable:$true] %s631
          %634 = dma.hbm_to_vmem [thread:$0]  %s629, 128, %s632, %s619
        $region80: #{tpu_custom_call.1} parent=75 // pred_fallthru
          _
      $region76: #{tpu_custom_call.1} parent=5 // pred_fallthru
        _
      %p635 = scmp.le.s32.totalorder 1, %s36
      %p636 = scmp.lt.s32.totalorder %s36, 5
      %p637 = pnand %p635, %p636
      %p638 = pneg %p637
      // Predicated region
      $region81: #{tpu_custom_call.1} parent=5 // pred_check
        _
      $region82: #{tpu_custom_call.1} parent=5 // pred_check_branch
        %640 = sbr.rel (%p637) target = $region84
      $region83: #{tpu_custom_call.1} parent=5 // pred_region
        %s641 = ssub.s32 %s36, 1
        %s642 = sand.u32 %s63, 1
        %s643 = scalar_lea.sflag [#allocation10], %s642
        %s644 = sand.u32 %s63, 1
        %s645 = smul.addr %s644, 8
        %s646 = scalar_lea.vmem [#allocation9], %s645
        // Predicated region
        $region85: #{tpu_custom_call.1} parent=83 // pred_check
          %p647 = pneg %p76
        $region86: #{tpu_custom_call.1} parent=83 // pred_check_branch
          %649 = sbr.rel (%p647) target = $region88
        $region87: #{tpu_custom_call.1} parent=83 // pred_region
          %650 = dma.done %s643, 128
        $region88: #{tpu_custom_call.1} parent=83 // pred_fallthru
          _
        // Predicated region
        $region89: #{tpu_custom_call.1} parent=83 // pred_check
          %p651 = pneg %p97
        $region90: #{tpu_custom_call.1} parent=83 // pred_check_branch
          %653 = sbr.rel (%p651) target = $region92
        $region91: #{tpu_custom_call.1} parent=83 // pred_region
          %654 = dma.done [#allocation13], 256
        $region92: #{tpu_custom_call.1} parent=83 // pred_fallthru
          _
        // Predicated region
        $region93: #{tpu_custom_call.1} parent=83 // pred_check
          %p655 = pneg %p118
        $region94: #{tpu_custom_call.1} parent=83 // pred_check_branch
          %657 = sbr.rel (%p655) target = $region96
        $region95: #{tpu_custom_call.1} parent=83 // pred_region
          %658 = dma.done [#allocation13], 64
        $region96: #{tpu_custom_call.1} parent=83 // pred_fallthru
          _
        // Predicated region
        $region97: #{tpu_custom_call.1} parent=83 // pred_check
          %p659 = pneg %p139
        $region98: #{tpu_custom_call.1} parent=83 // pred_check_branch
          %661 = sbr.rel (%p659) target = $region100
        $region99: #{tpu_custom_call.1} parent=83 // pred_region
          %662 = dma.done [#allocation16], 16
        $region100: #{tpu_custom_call.1} parent=83 // pred_fallthru
          _
        // Predicated region
        $region101: #{tpu_custom_call.1} parent=83 // pred_check
          %p663 = pneg %p160
        $region102: #{tpu_custom_call.1} parent=83 // pred_check_branch
          %665 = sbr.rel (%p663) target = $region104
        $region103: #{tpu_custom_call.1} parent=83 // pred_region
          %666 = dma.done [#allocation16], 1536
        $region104: #{tpu_custom_call.1} parent=83 // pred_fallthru
          _
        // Predicated region
        $region105: #{tpu_custom_call.1} parent=83 // pred_check
          %p667 = pneg %p181
        $region106: #{tpu_custom_call.1} parent=83 // pred_check_branch
          %669 = sbr.rel (%p667) target = $region108
        $region107: #{tpu_custom_call.1} parent=83 // pred_region
          %670 = dma.done [#allocation19], 16
        $region108: #{tpu_custom_call.1} parent=83 // pred_fallthru
          _
        // Predicated region
        $region109: #{tpu_custom_call.1} parent=83 // pred_check
          %p671 = pneg %p202
        $region110: #{tpu_custom_call.1} parent=83 // pred_check_branch
          %673 = sbr.rel (%p671) target = $region112
        $region111: #{tpu_custom_call.1} parent=83 // pred_region
          %674 = dma.done [#allocation19], 16
        $region112: #{tpu_custom_call.1} parent=83 // pred_fallthru
          _
        // Predicated region
        $region113: #{tpu_custom_call.1} parent=83 // pred_check
          %p675 = pneg %p223
        $region114: #{tpu_custom_call.1} parent=83 // pred_check_branch
          %677 = sbr.rel (%p675) target = $region116
        $region115: #{tpu_custom_call.1} parent=83 // pred_region
          %678 = dma.done [#allocation22], 256
        $region116: #{tpu_custom_call.1} parent=83 // pred_fallthru
          _
        // Predicated region
        $region117: #{tpu_custom_call.1} parent=83 // pred_check
          %p679 = pneg %p244
        $region118: #{tpu_custom_call.1} parent=83 // pred_check_branch
          %681 = sbr.rel (%p679) target = $region120
        $region119: #{tpu_custom_call.1} parent=83 // pred_region
          %682 = dma.done [#allocation22], 16
        $region120: #{tpu_custom_call.1} parent=83 // pred_fallthru
          _
        // Predicated region
        $region121: #{tpu_custom_call.1} parent=83 // pred_check
          %p683 = pneg %p265
        $region122: #{tpu_custom_call.1} parent=83 // pred_check_branch
          %685 = sbr.rel (%p683) target = $region124
        $region123: #{tpu_custom_call.1} parent=83 // pred_region
          %686 = dma.done [#allocation25], 512
        $region124: #{tpu_custom_call.1} parent=83 // pred_fallthru
          _
        // Predicated region
        $region125: #{tpu_custom_call.1} parent=83 // pred_check
          %p687 = pneg %p286
        $region126: #{tpu_custom_call.1} parent=83 // pred_check_branch
          %689 = sbr.rel (%p687) target = $region128
        $region127: #{tpu_custom_call.1} parent=83 // pred_region
          %690 = dma.done [#allocation25], 16
        $region128: #{tpu_custom_call.1} parent=83 // pred_fallthru
          _
        // Predicated region
        $region129: #{tpu_custom_call.1} parent=83 // pred_check
          %p691 = pneg %p307
        $region130: #{tpu_custom_call.1} parent=83 // pred_check_branch
          %693 = sbr.rel (%p691) target = $region132
        $region131: #{tpu_custom_call.1} parent=83 // pred_region
          %694 = dma.done [#allocation28], 16
        $region132: #{tpu_custom_call.1} parent=83 // pred_fallthru
          _
        // Predicated region
        $region133: #{tpu_custom_call.1} parent=83 // pred_check
          %p695 = pneg %p328
        $region134: #{tpu_custom_call.1} parent=83 // pred_check_branch
          %697 = sbr.rel (%p695) target = $region136
        $region135: #{tpu_custom_call.1} parent=83 // pred_region
          %698 = dma.done [#allocation28], 256
        $region136: #{tpu_custom_call.1} parent=83 // pred_fallthru
          _
        // Predicated region
        $region137: #{tpu_custom_call.1} parent=83 // pred_check
          %p699 = pneg %p349
        $region138: #{tpu_custom_call.1} parent=83 // pred_check_branch
          %701 = sbr.rel (%p699) target = $region140
        $region139: #{tpu_custom_call.1} parent=83 // pred_region
          %702 = dma.done [#allocation31], 16
        $region140: #{tpu_custom_call.1} parent=83 // pred_fallthru
          _
        // Predicated region
        $region141: #{tpu_custom_call.1} parent=83 // pred_check
          %p703 = pneg %p370
        $region142: #{tpu_custom_call.1} parent=83 // pred_check_branch
          %705 = sbr.rel (%p703) target = $region144
        $region143: #{tpu_custom_call.1} parent=83 // pred_region
          %706 = dma.done [#allocation31], 512
        $region144: #{tpu_custom_call.1} parent=83 // pred_fallthru
          _
        // Predicated region
        $region145: #{tpu_custom_call.1} parent=83 // pred_check
          %p707 = pneg %p391
        $region146: #{tpu_custom_call.1} parent=83 // pred_check_branch
          %709 = sbr.rel (%p707) target = $region148
        $region147: #{tpu_custom_call.1} parent=83 // pred_region
          %710 = dma.done [#allocation34], 16
        $region148: #{tpu_custom_call.1} parent=83 // pred_fallthru
          _
        %s711 = sand.u32 %s63, 1
        %s712 = scalar_lea.sflag [#allocation10], %s711
        %s713 = sand.u32 %s63, 1
        %s714 = smul.addr %s713, 8
        %s715 = scalar_lea.vmem [#allocation9], %s714
        %p716 = pneg %p76
        %p717 = pneg %p73
        %p718 = pneg %p97
        %p719 = pneg %p94
        %p720 = pneg %p118
        %p721 = pneg %p115
        %p722 = pneg %p139
        %p723 = pneg %p136
        %p724 = pneg %p160
        %p725 = pneg %p157
        %p726 = pneg %p181
        %p727 = pneg %p178
        %p728 = pneg %p202
        %p729 = pneg %p199
        %p730 = pneg %p223
        %p731 = pneg %p220
        %p732 = pneg %p244
        %p733 = pneg %p241
        %p734 = pneg %p265
        %p735 = pneg %p262
        %p736 = pneg %p286
        %p737 = pneg %p283
        %p738 = pneg %p307
        %p739 = pneg %p304
        %p740 = pneg %p328
        %p741 = pneg %p325
        %p742 = pneg %p349
        %p743 = pneg %p346
        %p744 = pneg %p370
        %p745 = pneg %p367
        %p746 = pneg %p391
        %p747 = pneg %p388
        %p748 = pneg %p419
        %p749 = pneg %p416
        %s750 = sand.u32 %s406, 1
        %s751 = scalar_lea.sflag [#allocation11], %s750
        %s752 = sand.u32 %s406, 1
        %s753 = smul.addr %s752, 8
        %s754 = scalar_lea.vmem [#allocation35], %s753
        %p756 = scmp.eq.s32.totalorder %s46, 0
        // Predicated region
        $region149: #{tpu_custom_call.1} parent=83 // pred_check
          %p757 = pneg %p756
        $region150: #{tpu_custom_call.1} parent=83 // pred_check_branch
          %759 = sbr.rel (%p757) target = $region152
        $region151: #{tpu_custom_call.1} parent=83 // pred_region
          %vm760 = vcmask 523264
          %761 = vst.msk [vmem:[#allocation2] sm:$0xff] %vm760, 0.0
          %762 = vst.msk [vmem:[#allocation2 + $0x8] sm:$0xff] %vm760, 0.0
          %vm763 = vcmask 518144
          %764 = vst.msk [vmem:[#allocation3] sm:$0x7] %vm763, 0.0
        $region152: #{tpu_custom_call.1} parent=83 // pred_fallthru
          _
        %v765 = vld [vmem:[%s646] sm:$0xff]
        %v766 = vpack.c.bf16 %v765, %v765
        %v767 = vld [vmem:[#allocation12] sm:$0xf]
        %v768 = vld [vmem:[#allocation12 + $0x4] sm:$0xf]
        %v769 = vld [vmem:[#allocation12 + $0x8] sm:$0xf]
        %v770 = vld [vmem:[#allocation12 + $0xc] sm:$0xf]
        %v775 = vunpack.c.l.b16 %v767
        %v776 = vunpack.c.l.b16 %v768
        %v777 = vunpack.c.l.b16 %v769
        %v778 = vunpack.c.l.b16 %v770
        %v779 = vpack.c.b16 %v776, %v775
        %v780 = vpack.c.b16 %v778, %v777
        %vm783 = vcmask 261120
        %v785 = vsel %vm783, %v766, 0
        %787 = vmatprep.subr.bf16.mxu0 0
        %788 = vmatpush1.bf16.msra.mxu0 %v779
        %789 = vmatprep.subr.bf16.mxu0 0
        %790 = vmatpush1.bf16.msra.mxu0 %v780
        %791 = vmatprep.subr.bf16.mxu0 0
        %792 = vmatpush1.bf16.msra.mxu0 0
        %793 = vmatprep.subr.bf16.mxu0 0
        %794 = vmatpush1.bf16.msra.mxu0 0
        %795 = vmatprep.subr.bf16.mxu0 0
        %796 = vmatpush1.bf16.msra.mxu0 0
        %797 = vmatprep.subr.bf16.mxu0 0
        %798 = vmatpush1.bf16.msra.mxu0 0
        %799 = vmatprep.subr.bf16.mxu0 0
        %800 = vmatpush1.bf16.msra.mxu0 0
        %801 = vmatprep.subr.bf16.mxu0 0
        %802 = vmatpush1.bf16.msra.mxu0 0
        %803 = vmatprep.subr.bf16.mxu0 0
        %804 = vmatpush1.bf16.msra.mxu0 0
        %805 = vmatprep.subr.bf16.mxu0 0
        %806 = vmatpush1.bf16.msra.mxu0 0
        %807 = vmatprep.subr.bf16.mxu0 0
        %808 = vmatpush1.bf16.msra.mxu0 0
        %809 = vmatprep.subr.bf16.mxu0 0
        %810 = vmatpush1.bf16.msra.mxu0 0
        %811 = vmatprep.subr.bf16.mxu0 0
        %812 = vmatpush1.bf16.msra.mxu0 0
        %813 = vmatprep.subr.bf16.mxu0 0
        %814 = vmatpush1.bf16.msra.mxu0 0
        %815 = vmatprep.subr.bf16.mxu0 0
        %816 = vmatpush1.bf16.msra.mxu0 0
        %817 = vmatprep.subr.bf16.mxu0 0
        %818 = vmatpush1.bf16.msra.mxu0 0
        %819 = vmatprep.mubr.bf16.mxu0 0
        %820 = vmatmul.mubr.bf16.gmra.mrb[0].mxu0 %v785
        %v821 = vpop.f32.mrb[0].mxu0
        %v822 = vadd.f32 0.0, %v821
        %v823 = vpop.f32.mrb[0].mxu0
        %v824 = vpop.f32.mrb[0].mxu0
        %v825 = vpop.f32.mrb[0].mxu0
        %826 = vdwg.mxu0
        %v827 = vld [vmem:[#allocation14] sm:$0xf]
        %v828 = vld [vmem:[#allocation3] sm:$0x7]
        %vm829 = vcmask 523269
        %830 = vst.msk [vmem:[#allocation3 - $0x5] sm:$0xe0] %vm829, %v822
        %v832 = vrot.slane %v822, 5
        %vm834 = vcmask 1042432
        %v835 = vsel %vm834, %v828, %v832
        %v836 = vlaneseq
        %v837 = vshrl.u32 %v836, 7
        %v838 = vsub.s32 3, %v837
        %v839 = vrot.slane %v827, %v838
        %v840 = vmul.f32 %v822, %v839
        %v841 = vlaneseq
        %v842 = vshrl.u32 %v841, 7
        %v843 = vsub.s32 0, %v842
        %v844 = vrot.slane %v827, %v843
        %v845 = vmul.f32 %v835, %v844
        %v846 = vadd.f32 %v840, %v845
        %v847 = vlaneseq
        %v848 = vshrl.u32 %v847, 7
        %v849 = vsub.s32 1, %v848
        %v850 = vrot.slane %v827, %v849
        %v851 = vmul.f32 %v835, %v850
        %v852 = vmul.f32 %v832, %v850
        %vm855 = vcmask 1046528
        %v856 = vrot.slane %v851, 1
        %v857 = vrot.slane %v852, 1
        %v858 = vsel %vm855, %v856, %v857
        %v860 = vadd.f32 %v846, %v858
        %v861 = vlaneseq
        %v862 = vshrl.u32 %v861, 7
        %v863 = vsub.s32 2, %v862
        %v864 = vrot.slane %v827, %v863
        %v865 = vmul.f32 %v835, %v864
        %v866 = vmul.f32 %v832, %v864
        %vm869 = vcmask 1045504
        %v870 = vrot.slane %v865, 2
        %v871 = vrot.slane %v866, 2
        %v872 = vsel %vm869, %v870, %v871
        %v874 = vadd.f32 %v860, %v872
        %v875 = vld [vmem:[#allocation15] sm:$0x1]
        %v877 = vlaneseq
        %v878 = vshrl.u32 %v877, 7
        %v879 = vsub.s32 0, %v878
        %v880 = vrot.slane %v875, %v879
        %v882 = vadd.f32 %v874, %v880
        %v883 = vsub.f32 0.0, %v882
        %v884 = vmul.f32 %v883, 1.442695
        %v885 = vpow.pop %v884
        %v886 = vadd.f32 %v885, 1.0
        %v887 = vrcp.pop %v886
        %v888 = vmul.f32 %v882, %v887
        %v889 = vpack.c.bf16 %v888, %v888
        %v890 = vld [vmem:[#allocation17] sm:$0xff]
        %v891 = vld [vmem:[#allocation17 + $0x8] sm:$0xf]
        %v892 = vld [vmem:[#allocation17 + $0xc] sm:$0xff]
        %v893 = vld [vmem:[#allocation17 + $0x14] sm:$0xf]
        %v894 = vld [vmem:[#allocation17 + $0x18] sm:$0xff]
        %v895 = vld [vmem:[#allocation17 + $0x20] sm:$0xf]
        %v896 = vld [vmem:[#allocation17 + $0x24] sm:$0xff]
        %v897 = vld [vmem:[#allocation17 + $0x2c] sm:$0xf]
        %v898 = vld [vmem:[#allocation17 + $0x30] sm:$0xff]
        %v899 = vld [vmem:[#allocation17 + $0x38] sm:$0xf]
        %v900 = vld [vmem:[#allocation17 + $0x3c] sm:$0xff]
        %v901 = vld [vmem:[#allocation17 + $0x44] sm:$0xf]
        %v902 = vld [vmem:[#allocation17 + $0x48] sm:$0xff]
        %v903 = vld [vmem:[#allocation17 + $0x50] sm:$0xf]
        %v904 = vld [vmem:[#allocation17 + $0x54] sm:$0xff]
        %v905 = vld [vmem:[#allocation17 + $0x5c] sm:$0xf]
        %v922 = vunpack.c.l.b16 %v890
        %v923 = vunpack.c.h.b16 %v890
        %v924 = vunpack.c.l.b16 %v891
        %v925 = vunpack.c.l.b16 %v892
        %v926 = vunpack.c.h.b16 %v892
        %v927 = vunpack.c.l.b16 %v893
        %v928 = vunpack.c.l.b16 %v894
        %v929 = vunpack.c.h.b16 %v894
        %v930 = vunpack.c.l.b16 %v895
        %v931 = vunpack.c.l.b16 %v896
        %v932 = vunpack.c.h.b16 %v896
        %v933 = vunpack.c.l.b16 %v897
        %v934 = vunpack.c.l.b16 %v898
        %v935 = vunpack.c.h.b16 %v898
        %v936 = vunpack.c.l.b16 %v899
        %v937 = vunpack.c.l.b16 %v900
        %v938 = vunpack.c.h.b16 %v900
        %v939 = vunpack.c.l.b16 %v901
        %v940 = vunpack.c.l.b16 %v902
        %v941 = vunpack.c.h.b16 %v902
        %v942 = vunpack.c.l.b16 %v903
        %v943 = vunpack.c.l.b16 %v904
        %v944 = vunpack.c.h.b16 %v904
        %v945 = vunpack.c.l.b16 %v905
        %v946 = vpack.c.b16 %v925, %v922
        %v947 = vpack.c.b16 %v926, %v923
        %v948 = vpack.c.b16 %v927, %v924
        %v949 = vpack.c.b16 %v931, %v928
        %v950 = vpack.c.b16 %v932, %v929
        %v951 = vpack.c.b16 %v933, %v930
        %v952 = vpack.c.b16 %v937, %v934
        %v953 = vpack.c.b16 %v938, %v935
        %v954 = vpack.c.b16 %v939, %v936
        %v955 = vpack.c.b16 %v943, %v940
        %v956 = vpack.c.b16 %v944, %v941
        %v957 = vpack.c.b16 %v945, %v942
        %vm970 = vcmask 523264
        %v972 = vsel %vm970, %v889, 0
        %974 = vmatprep.subr.bf16.mxu0 %v947
        %975 = vmatpush1.bf16.msra.mxu0 %v946
        %976 = vmatprep.subr.bf16.mxu0 %v950
        %977 = vmatpush1.bf16.msra.mxu0 %v949
        %978 = vmatprep.subr.bf16.mxu0 %v953
        %979 = vmatpush1.bf16.msra.mxu0 %v952
        %980 = vmatprep.subr.bf16.mxu0 %v956
        %981 = vmatpush1.bf16.msra.mxu0 %v955
        %982 = vmatprep.subr.bf16.mxu0 0
        %983 = vmatpush1.bf16.msra.mxu0 0
        %984 = vmatprep.subr.bf16.mxu0 0
        %985 = vmatpush1.bf16.msra.mxu0 0
        %986 = vmatprep.subr.bf16.mxu0 0
        %987 = vmatpush1.bf16.msra.mxu0 0
        %988 = vmatprep.subr.bf16.mxu0 0
        %989 = vmatpush1.bf16.msra.mxu0 0
        %990 = vmatprep.subr.bf16.mxu0 0
        %991 = vmatpush1.bf16.msra.mxu0 0
        %992 = vmatprep.subr.bf16.mxu0 0
        %993 = vmatpush1.bf16.msra.mxu0 0
        %994 = vmatprep.subr.bf16.mxu0 0
        %995 = vmatpush1.bf16.msra.mxu0 0
        %996 = vmatprep.subr.bf16.mxu0 0
        %997 = vmatpush1.bf16.msra.mxu0 0
        %998 = vmatprep.subr.bf16.mxu0 0
        %999 = vmatpush1.bf16.msra.mxu0 0
        %1000 = vmatprep.subr.bf16.mxu0 0
        %1001 = vmatpush1.bf16.msra.mxu0 0
        %1002 = vmatprep.subr.bf16.mxu0 0
        %1003 = vmatpush1.bf16.msra.mxu0 0
        %1004 = vmatprep.subr.bf16.mxu0 0
        %1005 = vmatpush1.bf16.msra.mxu0 0
        %1006 = vmatprep.mubr.bf16.mxu0 0
        %1007 = vmatmul.mubr.bf16.gmra.mrb[0].mxu0 %v972
        %v1008 = vpop.f32.mrb[0].mxu0
        %v1009 = vadd.f32 0.0, %v1008
        %v1010 = vpop.f32.mrb[0].mxu0
        %v1011 = vadd.f32 0.0, %v1010
        %v1012 = vpop.f32.mrb[0].mxu0
        %v1013 = vpop.f32.mrb[0].mxu0
        %1014 = vdwg.mxu0
        %1015 = vmatprep.subr.bf16.mxu0 0
        %1016 = vmatpush1.bf16.msra.mxu0 %v948
        %1017 = vmatprep.subr.bf16.mxu0 0
        %1018 = vmatpush1.bf16.msra.mxu0 %v951
        %1019 = vmatprep.subr.bf16.mxu0 0
        %1020 = vmatpush1.bf16.msra.mxu0 %v954
        %1021 = vmatprep.subr.bf16.mxu0 0
        %1022 = vmatpush1.bf16.msra.mxu0 %v957
        %1023 = vmatprep.subr.bf16.mxu0 0
        %1024 = vmatpush1.bf16.msra.mxu0 0
        %1025 = vmatprep.subr.bf16.mxu0 0
        %1026 = vmatpush1.bf16.msra.mxu0 0
        %1027 = vmatprep.subr.bf16.mxu0 0
        %1028 = vmatpush1.bf16.msra.mxu0 0
        %1029 = vmatprep.subr.bf16.mxu0 0
        %1030 = vmatpush1.bf16.msra.mxu0 0
        %1031 = vmatprep.subr.bf16.mxu0 0
        %1032 = vmatpush1.bf16.msra.mxu0 0
        %1033 = vmatprep.subr.bf16.mxu0 0
        %1034 = vmatpush1.bf16.msra.mxu0 0
        %1035 = vmatprep.subr.bf16.mxu0 0
        %1036 = vmatpush1.bf16.msra.mxu0 0
        %1037 = vmatprep.subr.bf16.mxu0 0
        %1038 = vmatpush1.bf16.msra.mxu0 0
        %1039 = vmatprep.subr.bf16.mxu0 0
        %1040 = vmatpush1.bf16.msra.mxu0 0
        %1041 = vmatprep.subr.bf16.mxu0 0
        %1042 = vmatpush1.bf16.msra.mxu0 0
        %1043 = vmatprep.subr.bf16.mxu0 0
        %1044 = vmatpush1.bf16.msra.mxu0 0
        %1045 = vmatprep.subr.bf16.mxu0 0
        %1046 = vmatpush1.bf16.msra.mxu0 0
        %1047 = vmatprep.mubr.bf16.mxu0 0
        %1048 = vmatmul.mubr.bf16.gmra.mrb[0].mxu0 %v972
        %v1049 = vpop.f32.mrb[0].mxu0
        %v1050 = vadd.f32 0.0, %v1049
        %v1051 = vpop.f32.mrb[0].mxu0
        %v1052 = vpop.f32.mrb[0].mxu0
        %v1053 = vpop.f32.mrb[0].mxu0
        %1054 = vdwg.mxu0
        %v1055 = vpack.c.bf16 %v1009, %v1009
        %v1056 = vld [vmem:[#allocation18] sm:$0x1]
        %v1057 = vld [vmem:[#allocation20] sm:$0x1]
        %v1059 = vlaneseq
        %v1060 = vshrl.u32 %v1059, 7
        %v1061 = vsub.s32 0, %v1060
        %v1062 = vrot.slane %v1057, %v1061
        %vm1064 = vcmask 15360
        %v1066 = vsel %vm1064, %v1055, 0
        %vm1068 = vcmask 1040384
        %v1070 = vsel %vm1068, %v1056, 0
        %1072 = vmatprep.subr.bf16.mxu0 0
        %1073 = vmatpush1.bf16.msra.mxu0 %v1070
        %1074 = vmatprep.subr.bf16.mxu0 0
        %1075 = vmatpush1.bf16.msra.mxu0 0
        %1076 = vmatprep.subr.bf16.mxu0 0
        %1077 = vmatpush1.bf16.msra.mxu0 0
        %1078 = vmatprep.subr.bf16.mxu0 0
        %1079 = vmatpush1.bf16.msra.mxu0 0
        %1080 = vmatprep.subr.bf16.mxu0 0
        %1081 = vmatpush1.bf16.msra.mxu0 0
        %1082 = vmatprep.subr.bf16.mxu0 0
        %1083 = vmatpush1.bf16.msra.mxu0 0
        %1084 = vmatprep.subr.bf16.mxu0 0
        %1085 = vmatpush1.bf16.msra.mxu0 0
        %1086 = vmatprep.subr.bf16.mxu0 0
        %1087 = vmatpush1.bf16.msra.mxu0 0
        %1088 = vmatprep.subr.bf16.mxu0 0
        %1089 = vmatpush1.bf16.msra.mxu0 0
        %1090 = vmatprep.subr.bf16.mxu0 0
        %1091 = vmatpush1.bf16.msra.mxu0 0
        %1092 = vmatprep.subr.bf16.mxu0 0
        %1093 = vmatpush1.bf16.msra.mxu0 0
        %1094 = vmatprep.subr.bf16.mxu0 0
        %1095 = vmatpush1.bf16.msra.mxu0 0
        %1096 = vmatprep.subr.bf16.mxu0 0
        %1097 = vmatpush1.bf16.msra.mxu0 0
        %1098 = vmatprep.subr.bf16.mxu0 0
        %1099 = vmatpush1.bf16.msra.mxu0 0
        %1100 = vmatprep.subr.bf16.mxu0 0
        %1101 = vmatpush1.bf16.msra.mxu0 0
        %1102 = vmatprep.subr.bf16.mxu0 0
        %1103 = vmatpush1.bf16.msra.mxu0 0
        %1104 = vmatprep.mubr.bf16.mxu0 0
        %1105 = vmatmul.mubr.bf16.gmra.mrb[0].mxu0 %v1066
        %v1106 = vpop.f32.mrb[0].mxu0
        %v1107 = vadd.f32 %v1062, %v1106
        %v1108 = vpop.f32.mrb[0].mxu0
        %v1109 = vpop.f32.mrb[0].mxu0
        %v1110 = vpop.f32.mrb[0].mxu0
        %1111 = vdwg.mxu0
        %vm1112 = vcmp.gt.f32.partialorder %v1107, 20.0
        %v1113 = vmin.f32 %v1107, 20.0
        %v1114 = vmul.f32 %v1113, 1.442695
        %v1115 = vpow.pop %v1114
        %v1116 = vadd.f32 %v1115, 1.0
        %v1117 = vlog2.pop %v1116
        %v1118 = vmul.f32 %v1117, 0.6931472
        %v1119 = vsel %vm1112, %v1107, %v1118
        %1120 = vst.msk [vmem:[#allocation4] sm:$0xff] %vm970, %v1119
        %v1121 = vmul.f32 %v1119, %v888
        %1122 = vst.msk [vmem:[#allocation5] sm:$0xff] %vm970, %v1121
        %vm1123 = vcmask 130048
        %1124 = vst.msk [vmem:[#allocation6] sm:$0xff] %vm1123, %v1011
        %1125 = vst.msk [vmem:[#allocation7] sm:$0xff] %vm1123, %v1050
        %v1126 = vld [vmem:[#allocation21] sm:$0xff]
        %v1127 = vld [vmem:[#allocation21 + $0x8] sm:$0xff]
        %v1128 = vlaneseq
        %v1129 = vshrl.u32 %v1128, 7
        %v1130 = vadd.s32 %v1129, 8
        %v1131 = vlaneseq
        %v1132 = vand.u32 %v1131, 127
        %vm1133 = vcmp.eq.s32.totalorder %v1129, %v1132
        %vm1134 = vcmp.eq.s32.totalorder %v1130, %v1132
        %v1135 = vsel %vm1133, 1, 0
        %v1136 = vsel %vm1134, 1, 0
        %v1137 = vcvt.s32.f32 %v1135
        %v1138 = vcvt.s32.f32 %v1136
        %v1139 = vld [vmem:[#allocation2] sm:$0xff]
        %v1140 = vld [vmem:[#allocation2 + $0x8] sm:$0xff]
        %v1141 = vld [vmem:[#allocation4] sm:$0x1]
        %v1142 = vld [vmem:[#allocation5] sm:$0x1]
        %v1143 = vld [vmem:[#allocation6] sm:$0x1]
        %v1144 = vld [vmem:[#allocation7] sm:$0x1]
        %v1145 = vlaneseq
        %v1146 = vshrl.u32 %v1145, 7
        %v1147 = vsub.s32 0, %v1146
        %v1148 = vrot.slane %v1143, %v1147
        %v1149 = vmul.f32 %v1137, %v1148
        %v1150 = vmul.f32 %v1138, %v1148
        %v1151 = vsel %vm1123, %v1149, 0.0
        %1152 = vadd.xlane.f32.xlu0 %v1151
        %v1153 = vpop.xlane.xlu0 %1152
        %v1154 = vsel %vm1123, %v1150, 0.0
        %1155 = vadd.xlane.f32.xlu0 %v1154
        %v1156 = vpop.xlane.xlu0 %1155
        %v1157 = vlaneseq
        %v1158 = vshrl.u32 %v1157, 7
        %v1159 = vsub.s32 0, %v1158
        %v1160 = vrot.slane %v1144, %v1159
        %v1161 = vmul.f32 %v1137, %v1160
        %v1162 = vmul.f32 %v1138, %v1160
        %v1163 = vsel %vm1123, %v1161, 0.0
        %1164 = vadd.xlane.f32.xlu0 %v1163
        %v1165 = vpop.xlane.xlu0 %1164
        %v1166 = vsel %vm1123, %v1162, 0.0
        %1167 = vadd.xlane.f32.xlu0 %v1166
        %v1168 = vpop.xlane.xlu0 %1167
        %v1169 = vlaneseq
        %v1170 = vshrl.u32 %v1169, 7
        %v1171 = vsub.s32 0, %v1170
        %v1172 = vrot.slane %v1141, %v1171
        %v1173 = vmul.f32 %v1172, %v1126
        %v1174 = vmul.f32 %v1172, %v1127
        %v1175 = vmul.f32 %v1173, 1.442695
        %v1176 = vpow.pop %v1175
        %v1177 = vmul.f32 %v1174, 1.442695
        %v1178 = vpow.pop %v1177
        %v1179 = vmul.f32 %v1176, %v1139
        %v1180 = vmul.f32 %v1178, %v1140
        %v1181 = vlaneseq
        %v1182 = vshrl.u32 %v1181, 7
        %v1183 = vsub.s32 0, %v1182
        %v1184 = vrot.slane %v1142, %v1183
        %v1185 = vmul.f32 %v1153, %v1184
        %v1186 = vmul.f32 %v1156, %v1184
        %v1187 = vadd.f32 %v1179, %v1185
        %v1188 = vadd.f32 %v1180, %v1186
        %v1189 = vmul.f32 %v1165, %v1187
        %v1190 = vmul.f32 %v1168, %v1188
        %v1191 = vsel %vm970, %v1189, 0.0
        %v1192 = vsel %vm970, %v1190, 0.0
        %v1193 = vadd.f32 %v1191, %v1192
        %v1194 = vrot.slane %v1193, 4
        %v1195 = vadd.f32 %v1193, %v1194
        %v1196 = vrot.slane %v1195, 2
        %v1197 = vadd.f32 %v1195, %v1196
        %v1198 = vrot.slane %v1197, 1
        %v1199 = vadd.f32 %v1197, %v1198
        %s1200 = sadd.s32 0, 1
        %s1201 = scalar_lea.vmem [#allocation4], %s1200
        %v1202 = vld [vmem:[%s1201] sm:$0x1]
        %s1203 = scalar_lea.vmem [#allocation5], %s1200
        %v1204 = vld [vmem:[%s1203] sm:$0x1]
        %s1205 = scalar_lea.vmem [#allocation6], %s1200
        %v1206 = vld [vmem:[%s1205] sm:$0x1]
        %s1207 = scalar_lea.vmem [#allocation7], %s1200
        %v1208 = vld [vmem:[%s1207] sm:$0x1]
        %v1209 = vlaneseq
        %v1210 = vshrl.u32 %v1209, 7
        %v1211 = vsub.s32 0, %v1210
        %v1212 = vrot.slane %v1206, %v1211
        %v1213 = vmul.f32 %v1137, %v1212
        %v1214 = vmul.f32 %v1138, %v1212
        %v1215 = vsel %vm1123, %v1213, 0.0
        %1216 = vadd.xlane.f32.xlu0 %v1215
        %v1217 = vpop.xlane.xlu0 %1216
        %v1218 = vsel %vm1123, %v1214, 0.0
        %1219 = vadd.xlane.f32.xlu0 %v1218
        %v1220 = vpop.xlane.xlu0 %1219
        %v1221 = vlaneseq
        %v1222 = vshrl.u32 %v1221, 7
        %v1223 = vsub.s32 0, %v1222
        %v1224 = vrot.slane %v1208, %v1223
        %v1225 = vmul.f32 %v1137, %v1224
        %v1226 = vmul.f32 %v1138, %v1224
        %v1227 = vsel %vm1123, %v1225, 0.0
        %1228 = vadd.xlane.f32.xlu0 %v1227
        %v1229 = vpop.xlane.xlu0 %1228
        %v1230 = vsel %vm1123, %v1226, 0.0
        %1231 = vadd.xlane.f32.xlu0 %v1230
        %v1232 = vpop.xlane.xlu0 %1231
        %v1233 = vlaneseq
        %v1234 = vshrl.u32 %v1233, 7
        %v1235 = vsub.s32 0, %v1234
        %v1236 = vrot.slane %v1202, %v1235
        %v1237 = vmul.f32 %v1236, %v1126
        %v1238 = vmul.f32 %v1236, %v1127
        %v1239 = vmul.f32 %v1237, 1.442695
        %v1240 = vpow.pop %v1239
        %v1241 = vmul.f32 %v1238, 1.442695
        %v1242 = vpow.pop %v1241
        %v1243 = vmul.f32 %v1240, %v1187
        %v1244 = vmul.f32 %v1242, %v1188
        %v1245 = vlaneseq
        %v1246 = vshrl.u32 %v1245, 7
        %v1247 = vsub.s32 0, %v1246
        %v1248 = vrot.slane %v1204, %v1247
        %v1249 = vmul.f32 %v1217, %v1248
        %v1250 = vmul.f32 %v1220, %v1248
        %v1251 = vadd.f32 %v1243, %v1249
        %v1252 = vadd.f32 %v1244, %v1250
        %v1253 = vmul.f32 %v1229, %v1251
        %v1254 = vmul.f32 %v1232, %v1252
        %v1255 = vsel %vm970, %v1253, 0.0
        %v1256 = vsel %vm970, %v1254, 0.0
        %v1257 = vadd.f32 %v1255, %v1256
        %v1258 = vrot.slane %v1257, 4
        %v1259 = vadd.f32 %v1257, %v1258
        %v1260 = vrot.slane %v1259, 2
        %v1261 = vadd.f32 %v1259, %v1260
        %v1262 = vrot.slane %v1261, 1
        %v1263 = vadd.f32 %v1261, %v1262
        %s1264 = sadd.s32 0, 2
        %s1265 = scalar_lea.vmem [#allocation4], %s1264
        %v1266 = vld [vmem:[%s1265] sm:$0x1]
        %s1267 = scalar_lea.vmem [#allocation5], %s1264
        %v1268 = vld [vmem:[%s1267] sm:$0x1]
        %s1269 = scalar_lea.vmem [#allocation6], %s1264
        %v1270 = vld [vmem:[%s1269] sm:$0x1]
        %s1271 = scalar_lea.vmem [#allocation7], %s1264
        %v1272 = vld [vmem:[%s1271] sm:$0x1]
        %v1273 = vlaneseq
        %v1274 = vshrl.u32 %v1273, 7
        %v1275 = vsub.s32 0, %v1274
        %v1276 = vrot.slane %v1270, %v1275
        %v1277 = vmul.f32 %v1137, %v1276
        %v1278 = vmul.f32 %v1138, %v1276
        %v1279 = vsel %vm1123, %v1277, 0.0
        %1280 = vadd.xlane.f32.xlu0 %v1279
        %v1281 = vpop.xlane.xlu0 %1280
        %v1282 = vsel %vm1123, %v1278, 0.0
        %1283 = vadd.xlane.f32.xlu0 %v1282
        %v1284 = vpop.xlane.xlu0 %1283
        %v1285 = vlaneseq
        %v1286 = vshrl.u32 %v1285, 7
        %v1287 = vsub.s32 0, %v1286
        %v1288 = vrot.slane %v1272, %v1287
        %v1289 = vmul.f32 %v1137, %v1288
        %v1290 = vmul.f32 %v1138, %v1288
        %v1291 = vsel %vm1123, %v1289, 0.0
        %1292 = vadd.xlane.f32.xlu0 %v1291
        %v1293 = vpop.xlane.xlu0 %1292
        %v1294 = vsel %vm1123, %v1290, 0.0
        %1295 = vadd.xlane.f32.xlu0 %v1294
        %v1296 = vpop.xlane.xlu0 %1295
        %v1297 = vlaneseq
        %v1298 = vshrl.u32 %v1297, 7
        %v1299 = vsub.s32 0, %v1298
        %v1300 = vrot.slane %v1266, %v1299
        %v1301 = vmul.f32 %v1300, %v1126
        %v1302 = vmul.f32 %v1300, %v1127
        %v1303 = vmul.f32 %v1301, 1.442695
        %v1304 = vpow.pop %v1303
        %v1305 = vmul.f32 %v1302, 1.442695
        %v1306 = vpow.pop %v1305
        %v1307 = vmul.f32 %v1304, %v1251
        %v1308 = vmul.f32 %v1306, %v1252
        %v1309 = vlaneseq
        %v1310 = vshrl.u32 %v1309, 7
        %v1311 = vsub.s32 0, %v1310
        %v1312 = vrot.slane %v1268, %v1311
        %v1313 = vmul.f32 %v1281, %v1312
        %v1314 = vmul.f32 %v1284, %v1312
        %v1315 = vadd.f32 %v1307, %v1313
        %v1316 = vadd.f32 %v1308, %v1314
        %v1317 = vmul.f32 %v1293, %v1315
        %v1318 = vmul.f32 %v1296, %v1316
        %v1319 = vsel %vm970, %v1317, 0.0
        %v1320 = vsel %vm970, %v1318, 0.0
        %v1321 = vadd.f32 %v1319, %v1320
        %v1322 = vrot.slane %v1321, 4
        %v1323 = vadd.f32 %v1321, %v1322
        %v1324 = vrot.slane %v1323, 2
        %v1325 = vadd.f32 %v1323, %v1324
        %v1326 = vrot.slane %v1325, 1
        %v1327 = vadd.f32 %v1325, %v1326
        %s1328 = sadd.s32 0, 3
        %s1329 = scalar_lea.vmem [#allocation4], %s1328
        %v1330 = vld [vmem:[%s1329] sm:$0x1]
        %s1331 = scalar_lea.vmem [#allocation5], %s1328
        %v1332 = vld [vmem:[%s1331] sm:$0x1]
        %s1333 = scalar_lea.vmem [#allocation6], %s1328
        %v1334 = vld [vmem:[%s1333] sm:$0x1]
        %s1335 = scalar_lea.vmem [#allocation7], %s1328
        %v1336 = vld [vmem:[%s1335] sm:$0x1]
        %v1337 = vlaneseq
        %v1338 = vshrl.u32 %v1337, 7
        %v1339 = vsub.s32 0, %v1338
        %v1340 = vrot.slane %v1334, %v1339
        %v1341 = vmul.f32 %v1137, %v1340
        %v1342 = vmul.f32 %v1138, %v1340
        %v1343 = vsel %vm1123, %v1341, 0.0
        %1344 = vadd.xlane.f32.xlu0 %v1343
        %v1345 = vpop.xlane.xlu0 %1344
        %v1346 = vsel %vm1123, %v1342, 0.0
        %1347 = vadd.xlane.f32.xlu0 %v1346
        %v1348 = vpop.xlane.xlu0 %1347
        %v1349 = vlaneseq
        %v1350 = vshrl.u32 %v1349, 7
        %v1351 = vsub.s32 0, %v1350
        %v1352 = vrot.slane %v1336, %v1351
        %v1353 = vmul.f32 %v1137, %v1352
        %v1354 = vmul.f32 %v1138, %v1352
        %v1355 = vsel %vm1123, %v1353, 0.0
        %1356 = vadd.xlane.f32.xlu0 %v1355
        %v1357 = vpop.xlane.xlu0 %1356
        %v1358 = vsel %vm1123, %v1354, 0.0
        %1359 = vadd.xlane.f32.xlu0 %v1358
        %v1360 = vpop.xlane.xlu0 %1359
        %v1361 = vlaneseq
        %v1362 = vshrl.u32 %v1361, 7
        %v1363 = vsub.s32 0, %v1362
        %v1364 = vrot.slane %v1330, %v1363
        %v1365 = vmul.f32 %v1364, %v1126
        %v1366 = vmul.f32 %v1364, %v1127
        %v1367 = vmul.f32 %v1365, 1.442695
        %v1368 = vpow.pop %v1367
        %v1369 = vmul.f32 %v1366, 1.442695
        %v1370 = vpow.pop %v1369
        %v1371 = vmul.f32 %v1368, %v1315
        %v1372 = vmul.f32 %v1370, %v1316
        %v1373 = vlaneseq
        %v1374 = vshrl.u32 %v1373, 7
        %v1375 = vsub.s32 0, %v1374
        %v1376 = vrot.slane %v1332, %v1375
        %v1377 = vmul.f32 %v1345, %v1376
        %v1378 = vmul.f32 %v1348, %v1376
        %v1379 = vadd.f32 %v1371, %v1377
        %v1380 = vadd.f32 %v1372, %v1378
        %v1381 = vmul.f32 %v1357, %v1379
        %v1382 = vmul.f32 %v1360, %v1380
        %v1383 = vsel %vm970, %v1381, 0.0
        %v1384 = vsel %vm970, %v1382, 0.0
        %v1385 = vadd.f32 %v1383, %v1384
        %v1386 = vrot.slane %v1385, 4
        %v1387 = vadd.f32 %v1385, %v1386
        %v1388 = vrot.slane %v1387, 2
        %v1389 = vadd.f32 %v1387, %v1388
        %v1390 = vrot.slane %v1389, 1
        %v1391 = vadd.f32 %v1389, %v1390
        %s1392 = sadd.s32 0, 4
        %s1393 = scalar_lea.vmem [#allocation4], %s1392
        %v1394 = vld [vmem:[%s1393] sm:$0x1]
        %s1395 = scalar_lea.vmem [#allocation5], %s1392
        %v1396 = vld [vmem:[%s1395] sm:$0x1]
        %s1397 = scalar_lea.vmem [#allocation6], %s1392
        %v1398 = vld [vmem:[%s1397] sm:$0x1]
        %s1399 = scalar_lea.vmem [#allocation7], %s1392
        %v1400 = vld [vmem:[%s1399] sm:$0x1]
        %v1401 = vlaneseq
        %v1402 = vshrl.u32 %v1401, 7
        %v1403 = vsub.s32 0, %v1402
        %v1404 = vrot.slane %v1398, %v1403
        %v1405 = vmul.f32 %v1137, %v1404
        %v1406 = vmul.f32 %v1138, %v1404
        %v1407 = vsel %vm1123, %v1405, 0.0
        %1408 = vadd.xlane.f32.xlu0 %v1407
        %v1409 = vpop.xlane.xlu0 %1408
        %v1410 = vsel %vm1123, %v1406, 0.0
        %1411 = vadd.xlane.f32.xlu0 %v1410
        %v1412 = vpop.xlane.xlu0 %1411
        %v1413 = vlaneseq
        %v1414 = vshrl.u32 %v1413, 7
        %v1415 = vsub.s32 0, %v1414
        %v1416 = vrot.slane %v1400, %v1415
        %v1417 = vmul.f32 %v1137, %v1416
        %v1418 = vmul.f32 %v1138, %v1416
        %v1419 = vsel %vm1123, %v1417, 0.0
        %1420 = vadd.xlane.f32.xlu0 %v1419
        %v1421 = vpop.xlane.xlu0 %1420
        %v1422 = vsel %vm1123, %v1418, 0.0
        %1423 = vadd.xlane.f32.xlu0 %v1422
        %v1424 = vpop.xlane.xlu0 %1423
        %v1425 = vlaneseq
        %v1426 = vshrl.u32 %v1425, 7
        %v1427 = vsub.s32 0, %v1426
        %v1428 = vrot.slane %v1394, %v1427
        %v1429 = vmul.f32 %v1428, %v1126
        %v1430 = vmul.f32 %v1428, %v1127
        %v1431 = vmul.f32 %v1429, 1.442695
        %v1432 = vpow.pop %v1431
        %v1433 = vmul.f32 %v1430, 1.442695
        %v1434 = vpow.pop %v1433
        %v1435 = vmul.f32 %v1432, %v1379
        %v1436 = vmul.f32 %v1434, %v1380
        %v1437 = vlaneseq
        %v1438 = vshrl.u32 %v1437, 7
        %v1439 = vsub.s32 0, %v1438
        %v1440 = vrot.slane %v1396, %v1439
        %v1441 = vmul.f32 %v1409, %v1440
        %v1442 = vmul.f32 %v1412, %v1440
        %v1443 = vadd.f32 %v1435, %v1441
        %v1444 = vadd.f32 %v1436, %v1442
        %v1445 = vmul.f32 %v1421, %v1443
        %v1446 = vmul.f32 %v1424, %v1444
        %v1447 = vsel %vm970, %v1445, 0.0
        %v1448 = vsel %vm970, %v1446, 0.0
        %v1449 = vadd.f32 %v1447, %v1448
        %v1450 = vrot.slane %v1449, 4
        %v1451 = vadd.f32 %v1449, %v1450
        %v1452 = vrot.slane %v1451, 2
        %v1453 = vadd.f32 %v1451, %v1452
        %v1454 = vrot.slane %v1453, 1
        %v1455 = vadd.f32 %v1453, %v1454
        %s1456 = sadd.s32 0, 5
        %s1457 = scalar_lea.vmem [#allocation4], %s1456
        %v1458 = vld [vmem:[%s1457] sm:$0x1]
        %s1459 = scalar_lea.vmem [#allocation5], %s1456
        %v1460 = vld [vmem:[%s1459] sm:$0x1]
        %s1461 = scalar_lea.vmem [#allocation6], %s1456
        %v1462 = vld [vmem:[%s1461] sm:$0x1]
        %s1463 = scalar_lea.vmem [#allocation7], %s1456
        %v1464 = vld [vmem:[%s1463] sm:$0x1]
        %v1465 = vlaneseq
        %v1466 = vshrl.u32 %v1465, 7
        %v1467 = vsub.s32 0, %v1466
        %v1468 = vrot.slane %v1462, %v1467
        %v1469 = vmul.f32 %v1137, %v1468
        %v1470 = vmul.f32 %v1138, %v1468
        %v1471 = vsel %vm1123, %v1469, 0.0
        %1472 = vadd.xlane.f32.xlu0 %v1471
        %v1473 = vpop.xlane.xlu0 %1472
        %v1474 = vsel %vm1123, %v1470, 0.0
        %1475 = vadd.xlane.f32.xlu0 %v1474
        %v1476 = vpop.xlane.xlu0 %1475
        %v1477 = vlaneseq
        %v1478 = vshrl.u32 %v1477, 7
        %v1479 = vsub.s32 0, %v1478
        %v1480 = vrot.slane %v1464, %v1479
        %v1481 = vmul.f32 %v1137, %v1480
        %v1482 = vmul.f32 %v1138, %v1480
        %v1483 = vsel %vm1123, %v1481, 0.0
        %1484 = vadd.xlane.f32.xlu0 %v1483
        %v1485 = vpop.xlane.xlu0 %1484
        %v1486 = vsel %vm1123, %v1482, 0.0
        %1487 = vadd.xlane.f32.xlu0 %v1486
        %v1488 = vpop.xlane.xlu0 %1487
        %v1489 = vlaneseq
        %v1490 = vshrl.u32 %v1489, 7
        %v1491 = vsub.s32 0, %v1490
        %v1492 = vrot.slane %v1458, %v1491
        %v1493 = vmul.f32 %v1492, %v1126
        %v1494 = vmul.f32 %v1492, %v1127
        %v1495 = vmul.f32 %v1493, 1.442695
        %v1496 = vpow.pop %v1495
        %v1497 = vmul.f32 %v1494, 1.442695
        %v1498 = vpow.pop %v1497
        %v1499 = vmul.f32 %v1496, %v1443
        %v1500 = vmul.f32 %v1498, %v1444
        %v1501 = vlaneseq
        %v1502 = vshrl.u32 %v1501, 7
        %v1503 = vsub.s32 0, %v1502
        %v1504 = vrot.slane %v1460, %v1503
        %v1505 = vmul.f32 %v1473, %v1504
        %v1506 = vmul.f32 %v1476, %v1504
        %v1507 = vadd.f32 %v1499, %v1505
        %v1508 = vadd.f32 %v1500, %v1506
        %v1509 = vmul.f32 %v1485, %v1507
        %v1510 = vmul.f32 %v1488, %v1508
        %v1511 = vsel %vm970, %v1509, 0.0
        %v1512 = vsel %vm970, %v1510, 0.0
        %v1513 = vadd.f32 %v1511, %v1512
        %v1514 = vrot.slane %v1513, 4
        %v1515 = vadd.f32 %v1513, %v1514
        %v1516 = vrot.slane %v1515, 2
        %v1517 = vadd.f32 %v1515, %v1516
        %v1518 = vrot.slane %v1517, 1
        %v1519 = vadd.f32 %v1517, %v1518
        %s1520 = sadd.s32 0, 6
        %s1521 = scalar_lea.vmem [#allocation4], %s1520
        %v1522 = vld [vmem:[%s1521] sm:$0x1]
        %s1523 = scalar_lea.vmem [#allocation5], %s1520
        %v1524 = vld [vmem:[%s1523] sm:$0x1]
        %s1525 = scalar_lea.vmem [#allocation6], %s1520
        %v1526 = vld [vmem:[%s1525] sm:$0x1]
        %s1527 = scalar_lea.vmem [#allocation7], %s1520
        %v1528 = vld [vmem:[%s1527] sm:$0x1]
        %v1529 = vlaneseq
        %v1530 = vshrl.u32 %v1529, 7
        %v1531 = vsub.s32 0, %v1530
        %v1532 = vrot.slane %v1526, %v1531
        %v1533 = vmul.f32 %v1137, %v1532
        %v1534 = vmul.f32 %v1138, %v1532
        %v1535 = vsel %vm1123, %v1533, 0.0
        %1536 = vadd.xlane.f32.xlu0 %v1535
        %v1537 = vpop.xlane.xlu0 %1536
        %v1538 = vsel %vm1123, %v1534, 0.0
        %1539 = vadd.xlane.f32.xlu0 %v1538
        %v1540 = vpop.xlane.xlu0 %1539
        %v1541 = vlaneseq
        %v1542 = vshrl.u32 %v1541, 7
        %v1543 = vsub.s32 0, %v1542
        %v1544 = vrot.slane %v1528, %v1543
        %v1545 = vmul.f32 %v1137, %v1544
        %v1546 = vmul.f32 %v1138, %v1544
        %v1547 = vsel %vm1123, %v1545, 0.0
        %1548 = vadd.xlane.f32.xlu0 %v1547
        %v1549 = vpop.xlane.xlu0 %1548
        %v1550 = vsel %vm1123, %v1546, 0.0
        %1551 = vadd.xlane.f32.xlu0 %v1550
        %v1552 = vpop.xlane.xlu0 %1551
        %v1553 = vlaneseq
        %v1554 = vshrl.u32 %v1553, 7
        %v1555 = vsub.s32 0, %v1554
        %v1556 = vrot.slane %v1522, %v1555
        %v1557 = vmul.f32 %v1556, %v1126
        %v1558 = vmul.f32 %v1556, %v1127
        %v1559 = vmul.f32 %v1557, 1.442695
        %v1560 = vpow.pop %v1559
        %v1561 = vmul.f32 %v1558, 1.442695
        %v1562 = vpow.pop %v1561
        %v1563 = vmul.f32 %v1560, %v1507
        %v1564 = vmul.f32 %v1562, %v1508
        %v1565 = vlaneseq
        %v1566 = vshrl.u32 %v1565, 7
        %v1567 = vsub.s32 0, %v1566
        %v1568 = vrot.slane %v1524, %v1567
        %v1569 = vmul.f32 %v1537, %v1568
        %v1570 = vmul.f32 %v1540, %v1568
        %v1571 = vadd.f32 %v1563, %v1569
        %v1572 = vadd.f32 %v1564, %v1570
        %v1573 = vmul.f32 %v1549, %v1571
        %v1574 = vmul.f32 %v1552, %v1572
        %v1575 = vsel %vm970, %v1573, 0.0
        %v1576 = vsel %vm970, %v1574, 0.0
        %v1577 = vadd.f32 %v1575, %v1576
        %v1578 = vrot.slane %v1577, 4
        %v1579 = vadd.f32 %v1577, %v1578
        %v1580 = vrot.slane %v1579, 2
        %v1581 = vadd.f32 %v1579, %v1580
        %v1582 = vrot.slane %v1581, 1
        %v1583 = vadd.f32 %v1581, %v1582
        %s1584 = sadd.s32 0, 7
        %s1585 = scalar_lea.vmem [#allocation4], %s1584
        %v1586 = vld [vmem:[%s1585] sm:$0x1]
        %s1587 = scalar_lea.vmem [#allocation5], %s1584
        %v1588 = vld [vmem:[%s1587] sm:$0x1]
        %s1589 = scalar_lea.vmem [#allocation6], %s1584
        %v1590 = vld [vmem:[%s1589] sm:$0x1]
        %s1591 = scalar_lea.vmem [#allocation7], %s1584
        %v1592 = vld [vmem:[%s1591] sm:$0x1]
        %v1593 = vlaneseq
        %v1594 = vshrl.u32 %v1593, 7
        %v1595 = vsub.s32 0, %v1594
        %v1596 = vrot.slane %v1590, %v1595
        %v1597 = vmul.f32 %v1137, %v1596
        %v1598 = vmul.f32 %v1138, %v1596
        %v1599 = vsel %vm1123, %v1597, 0.0
        %1600 = vadd.xlane.f32.xlu0 %v1599
        %v1601 = vpop.xlane.xlu0 %1600
        %v1602 = vsel %vm1123, %v1598, 0.0
        %1603 = vadd.xlane.f32.xlu0 %v1602
        %v1604 = vpop.xlane.xlu0 %1603
        %v1605 = vlaneseq
        %v1606 = vshrl.u32 %v1605, 7
        %v1607 = vsub.s32 0, %v1606
        %v1608 = vrot.slane %v1592, %v1607
        %v1609 = vmul.f32 %v1137, %v1608
        %v1610 = vmul.f32 %v1138, %v1608
        %v1611 = vsel %vm1123, %v1609, 0.0
        %1612 = vadd.xlane.f32.xlu0 %v1611
        %v1613 = vpop.xlane.xlu0 %1612
        %v1614 = vsel %vm1123, %v1610, 0.0
        %1615 = vadd.xlane.f32.xlu0 %v1614
        %v1616 = vpop.xlane.xlu0 %1615
        %v1617 = vlaneseq
        %v1618 = vshrl.u32 %v1617, 7
        %v1619 = vsub.s32 0, %v1618
        %v1620 = vrot.slane %v1586, %v1619
        %v1621 = vmul.f32 %v1620, %v1126
        %v1622 = vmul.f32 %v1620, %v1127
        %v1623 = vmul.f32 %v1621, 1.442695
        %v1624 = vpow.pop %v1623
        %v1625 = vmul.f32 %v1622, 1.442695
        %v1626 = vpow.pop %v1625
        %v1627 = vmul.f32 %v1624, %v1571
        %v1628 = vmul.f32 %v1626, %v1572
        %v1629 = vlaneseq
        %v1630 = vshrl.u32 %v1629, 7
        %v1631 = vsub.s32 0, %v1630
        %v1632 = vrot.slane %v1588, %v1631
        %v1633 = vmul.f32 %v1601, %v1632
        %v1634 = vmul.f32 %v1604, %v1632
        %v1635 = vadd.f32 %v1627, %v1633
        %v1636 = vadd.f32 %v1628, %v1634
        %v1637 = vmul.f32 %v1613, %v1635
        %v1638 = vmul.f32 %v1616, %v1636
        %v1639 = vsel %vm970, %v1637, 0.0
        %v1640 = vsel %vm970, %v1638, 0.0
        %v1641 = vadd.f32 %v1639, %v1640
        %v1642 = vrot.slane %v1641, 4
        %v1643 = vadd.f32 %v1641, %v1642
        %v1644 = vrot.slane %v1643, 2
        %v1645 = vadd.f32 %v1643, %v1644
        %v1646 = vrot.slane %v1645, 1
        %v1647 = vadd.f32 %v1645, %v1646
        %v1648 = vsel %vm1068, %v1199, %v1263
        %vm1649 = vcmask 1041408
        %v1650 = vsel %vm1649, %v1648, %v1327
        %v1651 = vsel %vm834, %v1650, %v1391
        %vm1652 = vcmask 1043456
        %v1653 = vsel %vm1652, %v1651, %v1455
        %vm1654 = vcmask 1044480
        %v1655 = vsel %vm1654, %v1653, %v1519
        %v1656 = vsel %vm869, %v1655, %v1583
        %v1657 = vsel %vm855, %v1656, %v1647
        %1658 = vst.msk [vmem:[#allocation8] sm:$0xff] %vm970, %v1657
        %1659 = vst.msk [vmem:[#allocation2] sm:$0xff] %vm970, %v1635
        %1660 = vst.msk [vmem:[#allocation2 + $0x8] sm:$0xff] %vm970, %v1636
        %v1661 = vld [vmem:[#allocation8] sm:$0xff]
        %v1662 = vld [vmem:[#allocation23] sm:$0x1]
        %v1664 = vlaneseq
        %v1665 = vshrl.u32 %v1664, 7
        %v1666 = vsub.s32 0, %v1665
        %v1667 = vrot.slane %v1662, %v1666
        %v1669 = vmul.f32 %v888, %v1667
        %v1670 = vadd.f32 %v1661, %v1669
        %v1671 = vsub.f32 0.0, %v822
        %v1672 = vmul.f32 %v1671, 1.442695
        %v1673 = vpow.pop %v1672
        %v1674 = vadd.f32 %v1673, 1.0
        %v1675 = vrcp.pop %v1674
        %v1676 = vmul.f32 %v822, %v1675
        %1678 = vrot.lane.b32.xlu0 %v1676, 64
        %v1679 = vpop.permute.xlu0 %1678
        %v1681 = vmul.f32 %v1670, %v1679
        %v1682 = vpack.c.bf16 %v1681, %v1681
        %v1683 = vld [vmem:[#allocation24] sm:$0xf]
        %v1684 = vld [vmem:[#allocation24 + $0x4] sm:$0xf]
        %v1685 = vld [vmem:[#allocation24 + $0x8] sm:$0xf]
        %v1686 = vld [vmem:[#allocation24 + $0xc] sm:$0xf]
        %v1687 = vld [vmem:[#allocation24 + $0x10] sm:$0xf]
        %v1688 = vld [vmem:[#allocation24 + $0x14] sm:$0xf]
        %v1689 = vld [vmem:[#allocation24 + $0x18] sm:$0xf]
        %v1690 = vld [vmem:[#allocation24 + $0x1c] sm:$0xf]
        %v1699 = vunpack.c.l.b16 %v1683
        %v1700 = vunpack.c.l.b16 %v1684
        %v1701 = vunpack.c.l.b16 %v1685
        %v1702 = vunpack.c.l.b16 %v1686
        %v1703 = vunpack.c.l.b16 %v1687
        %v1704 = vunpack.c.l.b16 %v1688
        %v1705 = vunpack.c.l.b16 %v1689
        %v1706 = vunpack.c.l.b16 %v1690
        %v1707 = vpack.c.b16 %v1700, %v1699
        %v1708 = vpack.c.b16 %v1702, %v1701
        %v1709 = vpack.c.b16 %v1704, %v1703
        %v1710 = vpack.c.b16 %v1706, %v1705
        %v1716 = vsel %vm970, %v1682, 0
        %1718 = vmatprep.subr.bf16.mxu0 0
        %1719 = vmatpush1.bf16.msra.mxu0 %v1707
        %1720 = vmatprep.subr.bf16.mxu0 0
        %1721 = vmatpush1.bf16.msra.mxu0 %v1708
        %1722 = vmatprep.subr.bf16.mxu0 0
        %1723 = vmatpush1.bf16.msra.mxu0 %v1709
        %1724 = vmatprep.subr.bf16.mxu0 0
        %1725 = vmatpush1.bf16.msra.mxu0 %v1710
        %1726 = vmatprep.subr.bf16.mxu0 0
        %1727 = vmatpush1.bf16.msra.mxu0 0
        %1728 = vmatprep.subr.bf16.mxu0 0
        %1729 = vmatpush1.bf16.msra.mxu0 0
        %1730 = vmatprep.subr.bf16.mxu0 0
        %1731 = vmatpush1.bf16.msra.mxu0 0
        %1732 = vmatprep.subr.bf16.mxu0 0
        %1733 = vmatpush1.bf16.msra.mxu0 0
        %1734 = vmatprep.subr.bf16.mxu0 0
        %1735 = vmatpush1.bf16.msra.mxu0 0
        %1736 = vmatprep.subr.bf16.mxu0 0
        %1737 = vmatpush1.bf16.msra.mxu0 0
        %1738 = vmatprep.subr.bf16.mxu0 0
        %1739 = vmatpush1.bf16.msra.mxu0 0
        %1740 = vmatprep.subr.bf16.mxu0 0
        %1741 = vmatpush1.bf16.msra.mxu0 0
        %1742 = vmatprep.subr.bf16.mxu0 0
        %1743 = vmatpush1.bf16.msra.mxu0 0
        %1744 = vmatprep.subr.bf16.mxu0 0
        %1745 = vmatpush1.bf16.msra.mxu0 0
        %1746 = vmatprep.subr.bf16.mxu0 0
        %1747 = vmatpush1.bf16.msra.mxu0 0
        %1748 = vmatprep.subr.bf16.mxu0 0
        %1749 = vmatpush1.bf16.msra.mxu0 0
        %1750 = vmatprep.mubr.bf16.mxu0 0
        %1751 = vmatmul.mubr.bf16.gmra.mrb[0].mxu0 %v1716
        %v1752 = vpop.f32.mrb[0].mxu0
        %v1753 = vadd.f32 0.0, %v1752
        %v1754 = vpop.f32.mrb[0].mxu0
        %v1755 = vpop.f32.mrb[0].mxu0
        %v1756 = vpop.f32.mrb[0].mxu0
        %1757 = vdwg.mxu0
        %v1758 = vsel %vm783, %v1753, 0.0
        %1759 = vadd.xlane.f32.xlu0 %v1758
        %v1760 = vpop.xlane.xlu0 %1759
        %v1761 = vrcp.pop 32.0
        %v1762 = vmul.f32 %v1760, %v1761
        %v1763 = vsub.f32 %v1753, %v1762
        %v1764 = vmul.f32 %v1763, %v1763
        %v1765 = vsel %vm783, %v1764, 0.0
        %1766 = vadd.xlane.f32.xlu0 %v1765
        %v1767 = vpop.xlane.xlu0 %1766
        %v1768 = vmul.f32 %v1767, %v1761
        %v1769 = vadd.f32 %v1768, 1e-05
        %v1770 = vrsqrt.pop %v1769
        %v1771 = vmul.f32 %v1763, %v1770
        %v1772 = vld [vmem:[#allocation26] sm:$0x1]
        %v1774 = vlaneseq
        %v1775 = vshrl.u32 %v1774, 7
        %v1776 = vsub.s32 0, %v1775
        %v1777 = vrot.slane %v1772, %v1776
        %v1779 = vmul.f32 %v1771, %v1777
        %v1780 = vld [vmem:[#allocation27] sm:$0x1]
        %v1782 = vlaneseq
        %v1783 = vshrl.u32 %v1782, 7
        %v1784 = vsub.s32 0, %v1783
        %v1785 = vrot.slane %v1780, %v1784
        %v1787 = vadd.f32 %v1779, %v1785
        %v1788 = vpack.c.bf16 %v1787, %v1787
        %v1789 = vld [vmem:[#allocation29] sm:$0xf]
        %v1790 = vld [vmem:[#allocation29 + $0x4] sm:$0xf]
        %v1791 = vld [vmem:[#allocation29 + $0x8] sm:$0xf]
        %v1792 = vld [vmem:[#allocation29 + $0xc] sm:$0xf]
        %v1793 = vld [vmem:[#allocation30] sm:$0x1]
        %v1795 = vlaneseq
        %v1796 = vshrl.u32 %v1795, 7
        %v1797 = vsub.s32 0, %v1796
        %v1798 = vrot.slane %v1793, %v1797
        %v1804 = vunpack.c.l.b16 %v1789
        %v1805 = vunpack.c.l.b16 %v1790
        %v1806 = vunpack.c.l.b16 %v1791
        %v1807 = vunpack.c.l.b16 %v1792
        %v1808 = vpack.c.b16 %v1805, %v1804
        %v1809 = vpack.c.b16 %v1807, %v1806
        %v1813 = vsel %vm783, %v1788, 0
        %1815 = vmatprep.subr.bf16.mxu0 0
        %1816 = vmatpush1.bf16.msra.mxu0 %v1808
        %1817 = vmatprep.subr.bf16.mxu0 0
        %1818 = vmatpush1.bf16.msra.mxu0 %v1809
        %1819 = vmatprep.subr.bf16.mxu0 0
        %1820 = vmatpush1.bf16.msra.mxu0 0
        %1821 = vmatprep.subr.bf16.mxu0 0
        %1822 = vmatpush1.bf16.msra.mxu0 0
        %1823 = vmatprep.subr.bf16.mxu0 0
        %1824 = vmatpush1.bf16.msra.mxu0 0
        %1825 = vmatprep.subr.bf16.mxu0 0
        %1826 = vmatpush1.bf16.msra.mxu0 0
        %1827 = vmatprep.subr.bf16.mxu0 0
        %1828 = vmatpush1.bf16.msra.mxu0 0
        %1829 = vmatprep.subr.bf16.mxu0 0
        %1830 = vmatpush1.bf16.msra.mxu0 0
        %1831 = vmatprep.subr.bf16.mxu0 0
        %1832 = vmatpush1.bf16.msra.mxu0 0
        %1833 = vmatprep.subr.bf16.mxu0 0
        %1834 = vmatpush1.bf16.msra.mxu0 0
        %1835 = vmatprep.subr.bf16.mxu0 0
        %1836 = vmatpush1.bf16.msra.mxu0 0
        %1837 = vmatprep.subr.bf16.mxu0 0
        %1838 = vmatpush1.bf16.msra.mxu0 0
        %1839 = vmatprep.subr.bf16.mxu0 0
        %1840 = vmatpush1.bf16.msra.mxu0 0
        %1841 = vmatprep.subr.bf16.mxu0 0
        %1842 = vmatpush1.bf16.msra.mxu0 0
        %1843 = vmatprep.subr.bf16.mxu0 0
        %1844 = vmatpush1.bf16.msra.mxu0 0
        %1845 = vmatprep.subr.bf16.mxu0 0
        %1846 = vmatpush1.bf16.msra.mxu0 0
        %1847 = vmatprep.mubr.bf16.mxu0 0
        %1848 = vmatmul.mubr.bf16.gmra.mrb[0].mxu0 %v1813
        %v1849 = vpop.f32.mrb[0].mxu0
        %v1850 = vadd.f32 %v1798, %v1849
        %v1851 = vpop.f32.mrb[0].mxu0
        %v1852 = vpop.f32.mrb[0].mxu0
        %v1853 = vpop.f32.mrb[0].mxu0
        %1854 = vdwg.mxu0
        %v1855 = vmul.f32 %v1850, 0.70710677
        %vm1856 = vcmp.ge.f32.partialorder %v1855, 0.0
        %v1857 = vsel %vm1856, 1.0, -1.0
        %v1858 = vand.u32 2147483647, %v1855
        %v1859 = vmul.f32 %v1858, 0.3275911
        %v1860 = vadd.f32 %v1859, 1.0
        %v1861 = vrcp.pop %v1860
        %v1862 = vmul.f32 %v1861, 1.0614054
        %v1863 = vadd.f32 %v1862, -1.4531521
        %v1864 = vmul.f32 %v1863, %v1861
        %v1865 = vadd.f32 %v1864, 1.4214138
        %v1866 = vmul.f32 %v1865, %v1861
        %v1867 = vadd.f32 %v1866, -0.28449672
        %v1868 = vmul.f32 %v1867, %v1861
        %v1869 = vadd.f32 %v1868, 0.2548296
        %v1870 = vmul.f32 %v1869, %v1861
        %v1871 = vsub.f32 0.0, %v1858
        %v1872 = vmul.f32 %v1871, %v1858
        %v1873 = vmul.f32 %v1872, 1.442695
        %v1874 = vpow.pop %v1873
        %v1875 = vmul.f32 %v1870, %v1874
        %v1876 = vsub.f32 1.0, %v1875
        %v1877 = vmul.f32 %v1857, %v1876
        %v1878 = vmul.f32 %v1850, 0.5
        %v1879 = vadd.f32 %v1877, 1.0
        %v1880 = vmul.f32 %v1878, %v1879
        %v1881 = vpack.c.bf16 %v1880, %v1880
        %v1882 = vld [vmem:[#allocation32] sm:$0xf]
        %v1883 = vld [vmem:[#allocation32 + $0x4] sm:$0xf]
        %v1884 = vld [vmem:[#allocation32 + $0x8] sm:$0xf]
        %v1885 = vld [vmem:[#allocation32 + $0xc] sm:$0xf]
        %v1886 = vld [vmem:[#allocation32 + $0x10] sm:$0xf]
        %v1887 = vld [vmem:[#allocation32 + $0x14] sm:$0xf]
        %v1888 = vld [vmem:[#allocation32 + $0x18] sm:$0xf]
        %v1889 = vld [vmem:[#allocation32 + $0x1c] sm:$0xf]
        %v1890 = vld [vmem:[#allocation33] sm:$0x1]
        %v1892 = vlaneseq
        %v1893 = vshrl.u32 %v1892, 7
        %v1894 = vsub.s32 0, %v1893
        %v1895 = vrot.slane %v1890, %v1894
        %v1905 = vunpack.c.l.b16 %v1882
        %v1906 = vunpack.c.l.b16 %v1883
        %v1907 = vunpack.c.l.b16 %v1884
        %v1908 = vunpack.c.l.b16 %v1885
        %v1909 = vunpack.c.l.b16 %v1886
        %v1910 = vunpack.c.l.b16 %v1887
        %v1911 = vunpack.c.l.b16 %v1888
        %v1912 = vunpack.c.l.b16 %v1889
        %v1913 = vpack.c.b16 %v1906, %v1905
        %v1914 = vpack.c.b16 %v1908, %v1907
        %v1915 = vpack.c.b16 %v1910, %v1909
        %v1916 = vpack.c.b16 %v1912, %v1911
        %v1922 = vsel %vm970, %v1881, 0
        %1924 = vmatprep.subr.bf16.mxu0 0
        %1925 = vmatpush1.bf16.msra.mxu0 %v1913
        %1926 = vmatprep.subr.bf16.mxu0 0
        %1927 = vmatpush1.bf16.msra.mxu0 %v1914
        %1928 = vmatprep.subr.bf16.mxu0 0
        %1929 = vmatpush1.bf16.msra.mxu0 %v1915
        %1930 = vmatprep.subr.bf16.mxu0 0
        %1931 = vmatpush1.bf16.msra.mxu0 %v1916
        %1932 = vmatprep.subr.bf16.mxu0 0
        %1933 = vmatpush1.bf16.msra.mxu0 0
        %1934 = vmatprep.subr.bf16.mxu0 0
        %1935 = vmatpush1.bf16.msra.mxu0 0
        %1936 = vmatprep.subr.bf16.mxu0 0
        %1937 = vmatpush1.bf16.msra.mxu0 0
        %1938 = vmatprep.subr.bf16.mxu0 0
        %1939 = vmatpush1.bf16.msra.mxu0 0
        %1940 = vmatprep.subr.bf16.mxu0 0
        %1941 = vmatpush1.bf16.msra.mxu0 0
        %1942 = vmatprep.subr.bf16.mxu0 0
        %1943 = vmatpush1.bf16.msra.mxu0 0
        %1944 = vmatprep.subr.bf16.mxu0 0
        %1945 = vmatpush1.bf16.msra.mxu0 0
        %1946 = vmatprep.subr.bf16.mxu0 0
        %1947 = vmatpush1.bf16.msra.mxu0 0
        %1948 = vmatprep.subr.bf16.mxu0 0
        %1949 = vmatpush1.bf16.msra.mxu0 0
        %1950 = vmatprep.subr.bf16.mxu0 0
        %1951 = vmatpush1.bf16.msra.mxu0 0
        %1952 = vmatprep.subr.bf16.mxu0 0
        %1953 = vmatpush1.bf16.msra.mxu0 0
        %1954 = vmatprep.subr.bf16.mxu0 0
        %1955 = vmatpush1.bf16.msra.mxu0 0
        %1956 = vmatprep.mubr.bf16.mxu0 0
        %1957 = vmatmul.mubr.bf16.gmra.mrb[0].mxu0 %v1922
        %v1958 = vpop.f32.mrb[0].mxu0
        %v1959 = vadd.f32 %v1895, %v1958
        %v1960 = vpop.f32.mrb[0].mxu0
        %v1961 = vpop.f32.mrb[0].mxu0
        %v1962 = vpop.f32.mrb[0].mxu0
        %1963 = vdwg.mxu0
        %v1964 = vadd.f32 %v1753, %v1959
        %1965 = vst.msk [vmem:[%s754] sm:$0xff] %vm783, %v1964
        %s1966 = sand.u32 %s406, 1
        %s1967 = scalar_lea.sflag [#allocation11], %s1966
        %s1968 = sand.u32 %s406, 1
        %s1969 = smul.addr %s1968, 8
        %s1970 = scalar_lea.vmem [#allocation35], %s1969
        // Predicated region
        $region153: #{tpu_custom_call.1} parent=83 // pred_check
          %p1971 = pneg %p416
        $region154: #{tpu_custom_call.1} parent=83 // pred_check_branch
          %1973 = sbr.rel (%p1971) target = $region156
        $region155: #{tpu_custom_call.1} parent=83 // pred_region
          %s1975 = ssub.s32 128, 128
          %1976 = vsyncadd %s1967, %s1975
          %s1977 = smul.addr %s45, 2
          %s1978 = sadd.s32 %s46, %s1977
          %s1979 = smul.addr %s1978, 128
          %s1980 = scalar_lea.hbm %s16, %s1979
          %s1982 = sshll.u32 %s1970, 4
          %s1983 = int_to_ptr.vmem [resolvable:$true] %s1982
          %1985 = dma.vmem_to_hbm [thread:$0]  %s1983, 128, %s1980, %s1967
        $region156: #{tpu_custom_call.1} parent=83 // pred_fallthru
          _
      $region84: #{tpu_custom_call.1} parent=5 // pred_fallthru
        _
      %p1986 = scmp.le.s32.totalorder 2, %s36
      // Predicated region
      $region157: #{tpu_custom_call.1} parent=5 // pred_check
        %p1987 = pneg %p1986
      $region158: #{tpu_custom_call.1} parent=5 // pred_check_branch
        %1989 = sbr.rel (%p1987) target = $region160
      $region159: #{tpu_custom_call.1} parent=5 // pred_region
        %s1990 = ssub.s32 %s36, 2
        // Predicated region
        $region161: #{tpu_custom_call.1} parent=159 // pred_check
          %p1991 = pneg %p422
        $region162: #{tpu_custom_call.1} parent=159 // pred_check_branch
          %1993 = sbr.rel (%p1991) target = $region164
        $region163: #{tpu_custom_call.1} parent=159 // pred_region
          %s1994 = sand.u32 %s407, 1
          %s1995 = scalar_lea.sflag [#allocation11], %s1994
          %s1996 = sand.u32 %s407, 1
          %s1997 = smul.addr %s1996, 8
          %s1998 = scalar_lea.vmem [#allocation35], %s1997
          %1999 = dma.done %s1995, 128
        $region164: #{tpu_custom_call.1} parent=159 // pred_fallthru
          _
      $region160: #{tpu_custom_call.1} parent=5 // pred_fallthru
        _
    $region6: #{tpu_custom_call.1} parent=1 // loop_footer
      %s40 = sadd.s32 1, %s36
    $region7: #{tpu_custom_call.1} parent=1 // loop_footer_branch
      %35 = sbr.rel target = $region3
    $region8: #{tpu_custom_call.1} parent=1 // loop_exit
      _
    %2000 = vsyncpa [#allocation10], 1
    %s2001 = scalar_lea.sflag [#allocation10], 1
    %2002 = vsyncpa %s2001, 1
    %2003 = vsyncpa [#allocation13], 1
    %2004 = vsyncpa [#allocation16], 1
    %2005 = vsyncpa [#allocation19], 1
    %2006 = vsyncpa [#allocation22], 1
    %2007 = vsyncpa [#allocation25], 1
    %2008 = vsyncpa [#allocation28], 1
    %2009 = vsyncpa [#allocation31], 1
    %2010 = vsyncpa [#allocation34], 1
    %2011 = vsyncpa [#allocation11], 1
    %s2012 = scalar_lea.sflag [#allocation11], 1
    %2013 = vsyncpa %s2012, 1

</llo_original>
